<compile_context>
chip_gen: v6e
topology: v6e:2x2x1
jax: 0.10.0
libtpu: 0.0.40
codegen_flags: <defaults>
</compile_context>

<pallas_src>
import jax
import jax.numpy as jnp
from jax.experimental import pallas as pl
from jax.experimental.pallas import tpu as pltpu


def _round_up(x, m):
    return ((x + m - 1) // m) * m


def _choose_tile_n(n, tile_n):
    """Pick the row-tile size: big tiles, but >= ~8 grid steps at large N."""
    tile_n = min(tile_n, n)
    if tile_n >= n:
        return n                       # single full-extent tile
    # Multiple tiles: keep >= ~8 grid steps so v7x's 2 TensorCores each get
    # several pipelined steps, and keep the tile a sublane (8) multiple.
    tile_n = min(tile_n, max(8, _round_up(pl.cdiv(n, 8), 8)))
    tile_n = _round_up(tile_n, 8)
    return min(tile_n, n)


def _encoder_kernel(x_ref, w_enc_ref, b_enc_ref, w_out_ref, b_out_ref, o_ref):
    # x_ref:     (TILE_N, D_IN)   concatenated [positions | time | cell]
    # w_enc_ref: (D_IN, F)        encoder weight (already K x F layout)
    # b_enc_ref: (1, F)           encoder bias
    # w_out_ref: (F, F)           output Linear weight (K x F layout)
    # b_out_ref: (1, F)           output Linear bias
    # o_ref:     (TILE_N, F)      unpadded output block
    h = (jnp.dot(x_ref[...], w_enc_ref[...], preferred_element_type=jnp.float32)
         + b_enc_ref[...])
    h = jnp.maximum(h, 0.0)  # ReLU inside the synthetic encoder
    y = (jnp.dot(h, w_out_ref[...], preferred_element_type=jnp.float32)
         + b_out_ref[...])
    o_ref[...] = y.astype(o_ref.dtype)


def encoder_test_model(positions, time_points, cell_features, params, *, tile_n=8192):
    """positions: (N, 3), time_points: (N, 1), cell_features: (N, C) -> (N, F)."""
    w_enc, b_enc, w_out, b_out = params

    # Single (N, D_IN) activation array: one DMA per grid step instead of
    # three sub-128-wide, lane-padded ones.  Its HBM cost (~32N bytes here)
    # is small next to the (N, 64) f32 output write.
    x = jnp.concatenate([positions, time_points, cell_features], axis=-1)
    x = x.astype(jnp.float32)
    n, d_in = x.shape
    f = w_out.shape[0]

    # PyTorch Linear computes x @ W.T + b with W of shape (out, in); transpose
    # once (tiny arrays).  No feature-dim padding: f == full last dim of every
    # weight / output array, which satisfies the (8,128) BlockSpec rule.
    w_enc_t = w_enc.T.astype(jnp.float32)            # (d_in, f)
    w_out_t = w_out.T.astype(jnp.float32)            # (f, f)
    b_enc_r = b_enc.reshape(1, f).astype(jnp.float32)
    b_out_r = b_out.reshape(1, f).astype(jnp.float32)

    tile_n = _choose_tile_n(n, tile_n)
    grid = (pl.cdiv(n, tile_n),)

    row_spec = lambda d: pl.BlockSpec((tile_n, d), lambda i: (i, 0))   # tiled over N
    const_spec = lambda shape: pl.BlockSpec(shape, lambda i: (0, 0))   # VMEM-resident

    out = pl.pallas_call(
        _encoder_kernel,
        out_shape=jax.ShapeDtypeStruct((n, f), jnp.float32),
        grid=grid,
        in_specs=[
            row_spec(d_in),
            const_spec((d_in, f)),
            const_spec((1, f)),
            const_spec((f, f)),
            const_spec((1, f)),
        ],
        out_specs=row_spec(f),
        compiler_params=pltpu.CompilerParams(
            dimension_semantics=("parallel",)),
    )(x, w_enc_t, b_enc_r, w_out_t, b_out_r)

    return out


def init_params(key, d_in, feature_dim):
    """Deterministic init mimicking nn.Linear's U(-1/sqrt(fan_in), 1/sqrt(fan_in))."""
    k1, k2, k3, k4 = jax.random.split(key, 4)
    bound_enc = 1.0 / jnp.sqrt(d_in)
    bound_out = 1.0 / jnp.sqrt(feature_dim)
    w_enc = jax.random.uniform(k1, (feature_dim, d_in), jnp.float32, -bound_enc, bound_enc)
    b_enc = jax.random.uniform(k2, (feature_dim,), jnp.float32, -bound_enc, bound_enc)
    w_out = jax.random.uniform(k3, (feature_dim, feature_dim), jnp.float32, -bound_out, bound_out)
    b_out = jax.random.uniform(k4, (feature_dim,), jnp.float32, -bound_out, bound_out)
    return w_enc, b_enc, w_out, b_out


def _reference(positions, time_points, cell_features, params):
    w_enc, b_enc, w_out, b_out = params
    x = jnp.concatenate([positions, time_points, cell_features], axis=-1)
    return jnp.maximum(x @ w_enc.T + b_enc, 0.0) @ w_out.T + b_out


if __name__ == "__main__":
    key = jax.random.PRNGKey(0)
    k_pos, k_time, k_cell, k_param = jax.random.split(key, 4)

    C = 4            # cell feature channels
    FEATURE_DIM = 64
    D_IN = 3 + 1 + C

    params = init_params(k_param, D_IN, FEATURE_DIM)

    # --- run 1: default tile size (single full-extent tile at this small N) ---
    N = 1024
    positions = jax.random.normal(k_pos, (N, 3), jnp.float32)
    time_points = jax.random.normal(k_time, (N, 1), jnp.float32)
    cell_features = jax.random.normal(k_cell, (N, C), jnp.float32)

    out = encoder_test_model(positions, time_points, cell_features, params)
    jax.block_until_ready(out)
    ref = _reference(positions, time_points, cell_features, params)
    assert out.shape == (N, FEATURE_DIM)
    assert jnp.allclose(out, ref, atol=1e-4, rtol=1e-4), float(jnp.max(jnp.abs(out - ref)))

    # --- run 2: multi-step grid with a partial last tile (exercises the
    #            pipelined path and masked partial-tile stores) ---
    N2 = 1000
    out2 = encoder_test_model(positions[:N2], time_points[:N2], cell_features[:N2],
                              params, tile_n=256)
    jax.block_until_ready(out2)
    ref2 = _reference(positions[:N2], time_points[:N2], cell_features[:N2], params)
    assert out2.shape == (N2, FEATURE_DIM)
    assert jnp.allclose(out2, ref2, atol=1e-4, rtol=1e-4), float(jnp.max(jnp.abs(out2 - ref2)))

    print("KERNEL_OK")
</pallas_src>

<mosaic_0001>
module attributes {stable_mosaic.version = 11 : i64} {
  func.func @_encoder_kernel(%arg0: i32, %arg1: memref<1024x8xf32, #tpu.memory_space<vmem>>, %arg2: memref<8x64xf32, #tpu.memory_space<vmem>>, %arg3: memref<1x64xf32, #tpu.memory_space<vmem>>, %arg4: memref<64x64xf32, #tpu.memory_space<vmem>>, %arg5: memref<1x64xf32, #tpu.memory_space<vmem>>, %arg6: memref<1024x64xf32, #tpu.memory_space<vmem>>) attributes {dimension_semantics = [#tpu.dimension_semantics<parallel>], iteration_bounds = array<i64: 1>, scalar_prefetch = 0 : i64, scratch_operands = 0 : i64, tpu.core_type = #tpu.core_type<tc>, window_params = [{transform_indices = @transform_0, window_bounds = array<i64: 1024, 8>}, {pipeline_mode = #tpu.pipeline_mode<synchronous>, transform_indices = @transform_1, window_bounds = array<i64: 8, 64>}, {pipeline_mode = #tpu.pipeline_mode<synchronous>, transform_indices = @transform_2, window_bounds = array<i64: 1, 64>}, {pipeline_mode = #tpu.pipeline_mode<synchronous>, transform_indices = @transform_3, window_bounds = array<i64: 64, 64>}, {pipeline_mode = #tpu.pipeline_mode<synchronous>, transform_indices = @transform_4, window_bounds = array<i64: 1, 64>}, {transform_indices = @transform_5, window_bounds = array<i64: 1024, 64>}]} {
    %c0 = arith.constant 0 : index
    %c0_0 = arith.constant 0 : index
    %0 = vector.load %arg1[%c0, %c0_0] : memref<1024x8xf32, #tpu.memory_space<vmem>>, vector<1024x8xf32>
    %c0_1 = arith.constant 0 : index
    %c0_2 = arith.constant 0 : index
    %1 = vector.load %arg2[%c0_1, %c0_2] : memref<8x64xf32, #tpu.memory_space<vmem>>, vector<8x64xf32>
    %cst = arith.constant dense<0.000000e+00> : vector<1024x64xf32>
    %2 = tpu.matmul %0, %1, %cst {dimension_numbers = #tpu.dot_dimension_numbers<[1], [0], [0], [1], [0, 0, 1, 1], [], []>} : vector<1024x8xf32>, vector<8x64xf32>, vector<1024x64xf32> -> vector<1024x64xf32>
    %c0_3 = arith.constant 0 : index
    %c0_4 = arith.constant 0 : index
    %3 = vector.load %arg3[%c0_3, %c0_4] : memref<1x64xf32, #tpu.memory_space<vmem>>, vector<1x64xf32>
    %4 = vector.broadcast %3 : vector<1x64xf32> to vector<1024x64xf32>
    %5 = arith.addf %2, %4 : vector<1024x64xf32>
    %cst_5 = arith.constant 0.000000e+00 : f32
    %6 = vector.broadcast %cst_5 : f32 to vector<1024x64xf32>
    %7 = arith.maximumf %5, %6 : vector<1024x64xf32>
    %c0_6 = arith.constant 0 : index
    %c0_7 = arith.constant 0 : index
    %8 = vector.load %arg4[%c0_6, %c0_7] : memref<64x64xf32, #tpu.memory_space<vmem>>, vector<64x64xf32>
    %cst_8 = arith.constant dense<0.000000e+00> : vector<1024x64xf32>
    %9 = tpu.matmul %7, %8, %cst_8 {dimension_numbers = #tpu.dot_dimension_numbers<[1], [0], [0], [1], [0, 0, 1, 1], [], []>} : vector<1024x64xf32>, vector<64x64xf32>, vector<1024x64xf32> -> vector<1024x64xf32>
    %c0_9 = arith.constant 0 : index
    %c0_10 = arith.constant 0 : index
    %10 = vector.load %arg5[%c0_9, %c0_10] : memref<1x64xf32, #tpu.memory_space<vmem>>, vector<1x64xf32>
    %11 = vector.broadcast %10 : vector<1x64xf32> to vector<1024x64xf32>
    %12 = arith.addf %9, %11 : vector<1024x64xf32>
    %c0_11 = arith.constant 0 : index
    %c0_12 = arith.constant 0 : index
    %13 = vector.load %arg6[%c0_11, %c0_12] : memref<1024x64xf32, #tpu.memory_space<vmem>>, vector<1024x64xf32>
    tpu.vector_store %arg6[%c0_11, %c0_12], %12 {strides = array<i32>} : memref<1024x64xf32, #tpu.memory_space<vmem>>, vector<1024x64xf32>,
    return
  }
  func.func @transform_0(%arg0: i32) -> (i32, i32) {
    %c0_i32 = arith.constant 0 : i32
    %c0_i32_0 = arith.constant 0 : i32
    return %arg0, %c0_i32 : i32, i32
  }
  func.func @transform_1(%arg0: i32) -> (i32, i32) {
    %c0_i32 = arith.constant 0 : i32
    %c0_i32_0 = arith.constant 0 : i32
    %c0_i32_1 = arith.constant 0 : i32
    return %c0_i32, %c0_i32_0 : i32, i32
  }
  func.func @transform_2(%arg0: i32) -> (i32, i32) {
    %c0_i32 = arith.constant 0 : i32
    %c0_i32_0 = arith.constant 0 : i32
    %c0_i32_1 = arith.constant 0 : i32
    return %c0_i32, %c0_i32_0 : i32, i32
  }
  func.func @transform_3(%arg0: i32) -> (i32, i32) {
    %c0_i32 = arith.constant 0 : i32
    %c0_i32_0 = arith.constant 0 : i32
    %c0_i32_1 = arith.constant 0 : i32
    return %c0_i32, %c0_i32_0 : i32, i32
  }
  func.func @transform_4(%arg0: i32) -> (i32, i32) {
    %c0_i32 = arith.constant 0 : i32
    %c0_i32_0 = arith.constant 0 : i32
    %c0_i32_1 = arith.constant 0 : i32
    return %c0_i32, %c0_i32_0 : i32, i32
  }
  func.func @transform_5(%arg0: i32) -> (i32, i32) {
    %c0_i32 = arith.constant 0 : i32
    %c0_i32_0 = arith.constant 0 : i32
    return %arg0, %c0_i32 : i32, i32
  }
}

</mosaic_0001>

<llo_original>
// kernel: tpu_custom_call.1
$region0: #{tpu_custom_call.1}
  #allocation0 [shape = 'u32[]', space=smem, size = 0x4, offset = 0x4, fixed_abs, tag = 'smem constant byte address 0x4 - core index']
  #allocation1 [shape = 'u32[144,128]{1,0:T(1,128)}', space=vmem, size = 0x12000, scoped, tag = 'internal scratch']
  %s0 = inlined_call_operand.vmem [shape: f32[1024,8], index: 0, kind: input, shape index: {}]
  %s1 = inlined_call_operand.vmem [shape: f32[8,64], index: 1, kind: input, shape index: {}]
  %s2 = inlined_call_operand.vmem [shape: f32[1,64], index: 2, kind: input, shape index: {}]
  %s3 = inlined_call_operand.vmem [shape: f32[64,64], index: 3, kind: input, shape index: {}]
  %s4 = inlined_call_operand.vmem [shape: f32[1,64], index: 4, kind: input, shape index: {}]
  %s5 = inlined_call_operand.vmem [shape: f32[1024,64], index: 5, kind: output, shape index: {}]
  %s6 = sld [smem:[#allocation0]]
  $region30: #{tpu_custom_call.1} parent=0
    _
  %s8 = ssub.s32 1, %s6
  %s9 = scalar_select 0, %s8, %s6
  // Predicated region
  $region2: #{tpu_custom_call.1} parent=0 // pred_check
    _
  $region3: #{tpu_custom_call.1} parent=0 // pred_check_branch
    %11 = sbr.rel (0) target = $region5
  $region4: #{tpu_custom_call.1} parent=0 // pred_region
    _
  $region5: #{tpu_custom_call.1} parent=0 // pred_fallthru
    _
  // Predicated region
  $region6: #{tpu_custom_call.1} parent=0 // pred_check
    _
  $region7: #{tpu_custom_call.1} parent=0 // pred_check_branch
    %13 = sbr.rel (0) target = $region9
  $region8: #{tpu_custom_call.1} parent=0 // pred_region
    _
  $region9: #{tpu_custom_call.1} parent=0 // pred_fallthru
    _
  // Predicated region
  $region10: #{tpu_custom_call.1} parent=0 // pred_check
    _
  $region11: #{tpu_custom_call.1} parent=0 // pred_check_branch
    %15 = sbr.rel (0) target = $region13
  $region12: #{tpu_custom_call.1} parent=0 // pred_region
    _
  $region13: #{tpu_custom_call.1} parent=0 // pred_fallthru
    _
  // Predicated region
  $region14: #{tpu_custom_call.1} parent=0 // pred_check
    _
  $region15: #{tpu_custom_call.1} parent=0 // pred_check_branch
    %17 = sbr.rel (0) target = $region17
  $region16: #{tpu_custom_call.1} parent=0 // pred_region
    _
  $region17: #{tpu_custom_call.1} parent=0 // pred_fallthru
    _
  // Predicated region
  $region18: #{tpu_custom_call.1} parent=0 // pred_check
    _
  $region19: #{tpu_custom_call.1} parent=0 // pred_check_branch
    %19 = sbr.rel (0) target = $region21
  $region20: #{tpu_custom_call.1} parent=0 // pred_region
    _
  $region21: #{tpu_custom_call.1} parent=0 // pred_fallthru
    _
  %v20 = vld [vmem:[%s0] sm:$0xff]
  %v21 = vld [vmem:[%s0 + $0x8] sm:$0xff]
  %v22 = vld [vmem:[%s0 + $0x10] sm:$0xff]
  %v23 = vld [vmem:[%s0 + $0x18] sm:$0xff]
  %v24 = vld [vmem:[%s0 + $0x20] sm:$0xff]
  %v25 = vld [vmem:[%s0 + $0x28] sm:$0xff]
  %v26 = vld [vmem:[%s0 + $0x30] sm:$0xff]
  %v27 = vld [vmem:[%s0 + $0x38] sm:$0xff]
  %v28 = vld [vmem:[%s0 + $0x40] sm:$0xff]
  %v29 = vld [vmem:[%s0 + $0x48] sm:$0xff]
  %v30 = vld [vmem:[%s0 + $0x50] sm:$0xff]
  %v31 = vld [vmem:[%s0 + $0x58] sm:$0xff]
  %v32 = vld [vmem:[%s0 + $0x60] sm:$0xff]
  %v33 = vld [vmem:[%s0 + $0x68] sm:$0xff]
  %v34 = vld [vmem:[%s0 + $0x70] sm:$0xff]
  %v35 = vld [vmem:[%s0 + $0x78] sm:$0xff]
  %v36 = vld [vmem:[%s0 + $0x80] sm:$0xff]
  %v37 = vld [vmem:[%s0 + $0x88] sm:$0xff]
  %v38 = vld [vmem:[%s0 + $0x90] sm:$0xff]
  %v39 = vld [vmem:[%s0 + $0x98] sm:$0xff]
  %v40 = vld [vmem:[%s0 + $0xa0] sm:$0xff]
  %v41 = vld [vmem:[%s0 + $0xa8] sm:$0xff]
  %v42 = vld [vmem:[%s0 + $0xb0] sm:$0xff]
  %v43 = vld [vmem:[%s0 + $0xb8] sm:$0xff]
  %v44 = vld [vmem:[%s0 + $0xc0] sm:$0xff]
  %v45 = vld [vmem:[%s0 + $0xc8] sm:$0xff]
  %v46 = vld [vmem:[%s0 + $0xd0] sm:$0xff]
  %v47 = vld [vmem:[%s0 + $0xd8] sm:$0xff]
  %v48 = vld [vmem:[%s0 + $0xe0] sm:$0xff]
  %v49 = vld [vmem:[%s0 + $0xe8] sm:$0xff]
  %v50 = vld [vmem:[%s0 + $0xf0] sm:$0xff]
  %v51 = vld [vmem:[%s0 + $0xf8] sm:$0xff]
  %v52 = vld [vmem:[%s0 + $0x100] sm:$0xff]
  %v53 = vld [vmem:[%s0 + $0x108] sm:$0xff]
  %v54 = vld [vmem:[%s0 + $0x110] sm:$0xff]
  %v55 = vld [vmem:[%s0 + $0x118] sm:$0xff]
  %v56 = vld [vmem:[%s0 + $0x120] sm:$0xff]
  %v57 = vld [vmem:[%s0 + $0x128] sm:$0xff]
  %v58 = vld [vmem:[%s0 + $0x130] sm:$0xff]
  %v59 = vld [vmem:[%s0 + $0x138] sm:$0xff]
  %v60 = vld [vmem:[%s0 + $0x140] sm:$0xff]
  %v61 = vld [vmem:[%s0 + $0x148] sm:$0xff]
  %v62 = vld [vmem:[%s0 + $0x150] sm:$0xff]
  %v63 = vld [vmem:[%s0 + $0x158] sm:$0xff]
  %v64 = vld [vmem:[%s0 + $0x160] sm:$0xff]
  %v65 = vld [vmem:[%s0 + $0x168] sm:$0xff]
  %v66 = vld [vmem:[%s0 + $0x170] sm:$0xff]
  %v67 = vld [vmem:[%s0 + $0x178] sm:$0xff]
  %v68 = vld [vmem:[%s0 + $0x180] sm:$0xff]
  %v69 = vld [vmem:[%s0 + $0x188] sm:$0xff]
  %v70 = vld [vmem:[%s0 + $0x190] sm:$0xff]
  %v71 = vld [vmem:[%s0 + $0x198] sm:$0xff]
  %v72 = vld [vmem:[%s0 + $0x1a0] sm:$0xff]
  %v73 = vld [vmem:[%s0 + $0x1a8] sm:$0xff]
  %v74 = vld [vmem:[%s0 + $0x1b0] sm:$0xff]
  %v75 = vld [vmem:[%s0 + $0x1b8] sm:$0xff]
  %v76 = vld [vmem:[%s0 + $0x1c0] sm:$0xff]
  %v77 = vld [vmem:[%s0 + $0x1c8] sm:$0xff]
  %v78 = vld [vmem:[%s0 + $0x1d0] sm:$0xff]
  %v79 = vld [vmem:[%s0 + $0x1d8] sm:$0xff]
  %v80 = vld [vmem:[%s0 + $0x1e0] sm:$0xff]
  %v81 = vld [vmem:[%s0 + $0x1e8] sm:$0xff]
  %v82 = vld [vmem:[%s0 + $0x1f0] sm:$0xff]
  %v83 = vld [vmem:[%s0 + $0x1f8] sm:$0xff]
  %v84 = vld [vmem:[%s0 + $0x200] sm:$0xff]
  %v85 = vld [vmem:[%s0 + $0x208] sm:$0xff]
  %v86 = vld [vmem:[%s0 + $0x210] sm:$0xff]
  %v87 = vld [vmem:[%s0 + $0x218] sm:$0xff]
  %v88 = vld [vmem:[%s0 + $0x220] sm:$0xff]
  %v89 = vld [vmem:[%s0 + $0x228] sm:$0xff]
  %v90 = vld [vmem:[%s0 + $0x230] sm:$0xff]
  %v91 = vld [vmem:[%s0 + $0x238] sm:$0xff]
  %v92 = vld [vmem:[%s0 + $0x240] sm:$0xff]
  %v93 = vld [vmem:[%s0 + $0x248] sm:$0xff]
  %v94 = vld [vmem:[%s0 + $0x250] sm:$0xff]
  %v95 = vld [vmem:[%s0 + $0x258] sm:$0xff]
  %v96 = vld [vmem:[%s0 + $0x260] sm:$0xff]
  %v97 = vld [vmem:[%s0 + $0x268] sm:$0xff]
  %v98 = vld [vmem:[%s0 + $0x270] sm:$0xff]
  %v99 = vld [vmem:[%s0 + $0x278] sm:$0xff]
  %v100 = vld [vmem:[%s0 + $0x280] sm:$0xff]
  %v101 = vld [vmem:[%s0 + $0x288] sm:$0xff]
  %v102 = vld [vmem:[%s0 + $0x290] sm:$0xff]
  %v103 = vld [vmem:[%s0 + $0x298] sm:$0xff]
  %v104 = vld [vmem:[%s0 + $0x2a0] sm:$0xff]
  %v105 = vld [vmem:[%s0 + $0x2a8] sm:$0xff]
  %v106 = vld [vmem:[%s0 + $0x2b0] sm:$0xff]
  %v107 = vld [vmem:[%s0 + $0x2b8] sm:$0xff]
  %v108 = vld [vmem:[%s0 + $0x2c0] sm:$0xff]
  %v109 = vld [vmem:[%s0 + $0x2c8] sm:$0xff]
  %v110 = vld [vmem:[%s0 + $0x2d0] sm:$0xff]
  %v111 = vld [vmem:[%s0 + $0x2d8] sm:$0xff]
  %v112 = vld [vmem:[%s0 + $0x2e0] sm:$0xff]
  %v113 = vld [vmem:[%s0 + $0x2e8] sm:$0xff]
  %v114 = vld [vmem:[%s0 + $0x2f0] sm:$0xff]
  %v115 = vld [vmem:[%s0 + $0x2f8] sm:$0xff]
  %v116 = vld [vmem:[%s0 + $0x300] sm:$0xff]
  %v117 = vld [vmem:[%s0 + $0x308] sm:$0xff]
  %v118 = vld [vmem:[%s0 + $0x310] sm:$0xff]
  %v119 = vld [vmem:[%s0 + $0x318] sm:$0xff]
  %v120 = vld [vmem:[%s0 + $0x320] sm:$0xff]
  %v121 = vld [vmem:[%s0 + $0x328] sm:$0xff]
  %v122 = vld [vmem:[%s0 + $0x330] sm:$0xff]
  %v123 = vld [vmem:[%s0 + $0x338] sm:$0xff]
  %v124 = vld [vmem:[%s0 + $0x340] sm:$0xff]
  %v125 = vld [vmem:[%s0 + $0x348] sm:$0xff]
  %v126 = vld [vmem:[%s0 + $0x350] sm:$0xff]
  %v127 = vld [vmem:[%s0 + $0x358] sm:$0xff]
  %v128 = vld [vmem:[%s0 + $0x360] sm:$0xff]
  %v129 = vld [vmem:[%s0 + $0x368] sm:$0xff]
  %v130 = vld [vmem:[%s0 + $0x370] sm:$0xff]
  %v131 = vld [vmem:[%s0 + $0x378] sm:$0xff]
  %v132 = vld [vmem:[%s0 + $0x380] sm:$0xff]
  %v133 = vld [vmem:[%s0 + $0x388] sm:$0xff]
  %v134 = vld [vmem:[%s0 + $0x390] sm:$0xff]
  %v135 = vld [vmem:[%s0 + $0x398] sm:$0xff]
  %v136 = vld [vmem:[%s0 + $0x3a0] sm:$0xff]
  %v137 = vld [vmem:[%s0 + $0x3a8] sm:$0xff]
  %v138 = vld [vmem:[%s0 + $0x3b0] sm:$0xff]
  %v139 = vld [vmem:[%s0 + $0x3b8] sm:$0xff]
  %v140 = vld [vmem:[%s0 + $0x3c0] sm:$0xff]
  %v141 = vld [vmem:[%s0 + $0x3c8] sm:$0xff]
  %v142 = vld [vmem:[%s0 + $0x3d0] sm:$0xff]
  %v143 = vld [vmem:[%s0 + $0x3d8] sm:$0xff]
  %v144 = vld [vmem:[%s0 + $0x3e0] sm:$0xff]
  %v145 = vld [vmem:[%s0 + $0x3e8] sm:$0xff]
  %v146 = vld [vmem:[%s0 + $0x3f0] sm:$0xff]
  %v147 = vld [vmem:[%s0 + $0x3f8] sm:$0xff]
  %v148 = vld [vmem:[%s1] sm:$0xff]
  %v149 = vld [vmem:[%s2] sm:$0x1]
  %v151 = vlaneseq
  %v152 = vshrl.u32 %v151, 7
  %v153 = vsub.s32 0, %v152
  %v154 = vrot.slane %v149, %v153
  %vm156 = vcmask 64512
  %v158 = vsel %vm156, %v20, 0
  %v161 = vsel %vm156, %v21, 0
  %v164 = vsel %vm156, %v22, 0
  %v167 = vsel %vm156, %v23, 0
  %v170 = vsel %vm156, %v24, 0
  %v173 = vsel %vm156, %v25, 0
  %v176 = vsel %vm156, %v26, 0
  %v179 = vsel %vm156, %v27, 0
  %v182 = vsel %vm156, %v28, 0
  %v185 = vsel %vm156, %v29, 0
  %v188 = vsel %vm156, %v30, 0
  %v191 = vsel %vm156, %v31, 0
  %v194 = vsel %vm156, %v32, 0
  %v197 = vsel %vm156, %v33, 0
  %v200 = vsel %vm156, %v34, 0
  %v203 = vsel %vm156, %v35, 0
  %v206 = vsel %vm156, %v36, 0
  %v209 = vsel %vm156, %v37, 0
  %v212 = vsel %vm156, %v38, 0
  %v215 = vsel %vm156, %v39, 0
  %v218 = vsel %vm156, %v40, 0
  %v221 = vsel %vm156, %v41, 0
  %v224 = vsel %vm156, %v42, 0
  %v227 = vsel %vm156, %v43, 0
  %v230 = vsel %vm156, %v44, 0
  %v233 = vsel %vm156, %v45, 0
  %v236 = vsel %vm156, %v46, 0
  %v239 = vsel %vm156, %v47, 0
  %v242 = vsel %vm156, %v48, 0
  %v245 = vsel %vm156, %v49, 0
  %v248 = vsel %vm156, %v50, 0
  %v251 = vsel %vm156, %v51, 0
  %v254 = vsel %vm156, %v52, 0
  %v257 = vsel %vm156, %v53, 0
  %v260 = vsel %vm156, %v54, 0
  %v263 = vsel %vm156, %v55, 0
  %v266 = vsel %vm156, %v56, 0
  %v269 = vsel %vm156, %v57, 0
  %v272 = vsel %vm156, %v58, 0
  %v275 = vsel %vm156, %v59, 0
  %v278 = vsel %vm156, %v60, 0
  %v281 = vsel %vm156, %v61, 0
  %v284 = vsel %vm156, %v62, 0
  %v287 = vsel %vm156, %v63, 0
  %v290 = vsel %vm156, %v64, 0
  %v293 = vsel %vm156, %v65, 0
  %v296 = vsel %vm156, %v66, 0
  %v299 = vsel %vm156, %v67, 0
  %v302 = vsel %vm156, %v68, 0
  %v305 = vsel %vm156, %v69, 0
  %v308 = vsel %vm156, %v70, 0
  %v311 = vsel %vm156, %v71, 0
  %v314 = vsel %vm156, %v72, 0
  %v317 = vsel %vm156, %v73, 0
  %v320 = vsel %vm156, %v74, 0
  %v323 = vsel %vm156, %v75, 0
  %v326 = vsel %vm156, %v76, 0
  %v329 = vsel %vm156, %v77, 0
  %v332 = vsel %vm156, %v78, 0
  %v335 = vsel %vm156, %v79, 0
  %v338 = vsel %vm156, %v80, 0
  %v341 = vsel %vm156, %v81, 0
  %v344 = vsel %vm156, %v82, 0
  %v347 = vsel %vm156, %v83, 0
  %v350 = vsel %vm156, %v84, 0
  %v353 = vsel %vm156, %v85, 0
  %v356 = vsel %vm156, %v86, 0
  %v359 = vsel %vm156, %v87, 0
  %v362 = vsel %vm156, %v88, 0
  %v365 = vsel %vm156, %v89, 0
  %v368 = vsel %vm156, %v90, 0
  %v371 = vsel %vm156, %v91, 0
  %v374 = vsel %vm156, %v92, 0
  %v377 = vsel %vm156, %v93, 0
  %v380 = vsel %vm156, %v94, 0
  %v383 = vsel %vm156, %v95, 0
  %v386 = vsel %vm156, %v96, 0
  %v389 = vsel %vm156, %v97, 0
  %v392 = vsel %vm156, %v98, 0
  %v395 = vsel %vm156, %v99, 0
  %v398 = vsel %vm156, %v100, 0
  %v401 = vsel %vm156, %v101, 0
  %v404 = vsel %vm156, %v102, 0
  %v407 = vsel %vm156, %v103, 0
  %v410 = vsel %vm156, %v104, 0
  %v413 = vsel %vm156, %v105, 0
  %v416 = vsel %vm156, %v106, 0
  %v419 = vsel %vm156, %v107, 0
  %v422 = vsel %vm156, %v108, 0
  %v425 = vsel %vm156, %v109, 0
  %v428 = vsel %vm156, %v110, 0
  %v431 = vsel %vm156, %v111, 0
  %v434 = vsel %vm156, %v112, 0
  %v437 = vsel %vm156, %v113, 0
  %v440 = vsel %vm156, %v114, 0
  %v443 = vsel %vm156, %v115, 0
  %v446 = vsel %vm156, %v116, 0
  %v449 = vsel %vm156, %v117, 0
  %v452 = vsel %vm156, %v118, 0
  %v455 = vsel %vm156, %v119, 0
  %v458 = vsel %vm156, %v120, 0
  %v461 = vsel %vm156, %v121, 0
  %v464 = vsel %vm156, %v122, 0
  %v467 = vsel %vm156, %v123, 0
  %v470 = vsel %vm156, %v124, 0
  %v473 = vsel %vm156, %v125, 0
  %v476 = vsel %vm156, %v126, 0
  %v479 = vsel %vm156, %v127, 0
  %v482 = vsel %vm156, %v128, 0
  %v485 = vsel %vm156, %v129, 0
  %v488 = vsel %vm156, %v130, 0
  %v491 = vsel %vm156, %v131, 0
  %v494 = vsel %vm156, %v132, 0
  %v497 = vsel %vm156, %v133, 0
  %v500 = vsel %vm156, %v134, 0
  %v503 = vsel %vm156, %v135, 0
  %v506 = vsel %vm156, %v136, 0
  %v509 = vsel %vm156, %v137, 0
  %v512 = vsel %vm156, %v138, 0
  %v515 = vsel %vm156, %v139, 0
  %v518 = vsel %vm156, %v140, 0
  %v521 = vsel %vm156, %v141, 0
  %v524 = vsel %vm156, %v142, 0
  %v527 = vsel %vm156, %v143, 0
  %v530 = vsel %vm156, %v144, 0
  %v533 = vsel %vm156, %v145, 0
  %v536 = vsel %vm156, %v146, 0
  %v539 = vsel %vm156, %v147, 0
  %541 = vmatprep.subr.mxu0 0.0
  %542 = vmatpush1.msra.mxu0 0.0
  %543 = vmatprep.subr.mxu0 0.0
  %544 = vmatpush1.msra.mxu0 0.0
  %545 = vmatprep.subr.mxu0 0.0
  %546 = vmatpush1.msra.mxu0 0.0
  %547 = vmatprep.subr.mxu0 0.0
  %548 = vmatpush1.msra.mxu0 0.0
  %549 = vmatprep.subr.mxu0 0.0
  %550 = vmatpush1.msra.mxu0 0.0
  %551 = vmatprep.subr.mxu0 0.0
  %552 = vmatpush1.msra.mxu0 0.0
  %553 = vmatprep.subr.mxu0 0.0
  %554 = vmatpush1.msra.mxu0 0.0
  %555 = vmatprep.subr.mxu0 0.0
  %556 = vmatpush1.msra.mxu0 0.0
  %557 = vmatprep.subr.mxu0 0.0
  %558 = vmatpush1.msra.mxu0 0.0
  %559 = vmatprep.subr.mxu0 0.0
  %560 = vmatpush1.msra.mxu0 0.0
  %561 = vmatprep.subr.mxu0 0.0
  %562 = vmatpush1.msra.mxu0 0.0
  %563 = vmatprep.subr.mxu0 0.0
  %564 = vmatpush1.msra.mxu0 0.0
  %565 = vmatprep.subr.mxu0 0.0
  %566 = vmatpush1.msra.mxu0 0.0
  %567 = vmatprep.subr.mxu0 0.0
  %568 = vmatpush1.msra.mxu0 0.0
  %569 = vmatprep.subr.mxu0 0.0
  %570 = vmatpush1.msra.mxu0 0.0
  %571 = vmatprep.subr.mxu0 0.0
  %572 = vmatpush1.msra.mxu0 %v148
  %573 = vmatprep.subr.mxu0 0.0
  %574 = vmatpush2.msra.mxu0 0.0
  %575 = vmatprep.subr.mxu0 0.0
  %576 = vmatpush2.msra.mxu0 0.0
  %577 = vmatprep.subr.mxu0 0.0
  %578 = vmatpush2.msra.mxu0 0.0
  %579 = vmatprep.subr.mxu0 0.0
  %580 = vmatpush2.msra.mxu0 0.0
  %581 = vmatprep.subr.mxu0 0.0
  %582 = vmatpush2.msra.mxu0 0.0
  %583 = vmatprep.subr.mxu0 0.0
  %584 = vmatpush2.msra.mxu0 0.0
  %585 = vmatprep.subr.mxu0 0.0
  %586 = vmatpush2.msra.mxu0 0.0
  %587 = vmatprep.subr.mxu0 0.0
  %588 = vmatpush2.msra.mxu0 0.0
  %589 = vmatprep.subr.mxu0 0.0
  %590 = vmatpush2.msra.mxu0 0.0
  %591 = vmatprep.subr.mxu0 0.0
  %592 = vmatpush2.msra.mxu0 0.0
  %593 = vmatprep.subr.mxu0 0.0
  %594 = vmatpush2.msra.mxu0 0.0
  %595 = vmatprep.subr.mxu0 0.0
  %596 = vmatpush2.msra.mxu0 0.0
  %597 = vmatprep.subr.mxu0 0.0
  %598 = vmatpush2.msra.mxu0 0.0
  %599 = vmatprep.subr.mxu0 0.0
  %600 = vmatpush2.msra.mxu0 0.0
  %601 = vmatprep.subr.mxu0 0.0
  %602 = vmatpush2.msra.mxu0 0.0
  %603 = vmatprep.subr.mxu0 0.0
  %604 = vmatpush2.msra.mxu0 0.0
  %605 = vmatprep.mubr.f32.mxu0 0.0
  %606 = vmatmul.mubr.f32.gmra.mxu0 %v158
  %v607 = vpop.f32.mrf.mxu0
  %v608 = vadd.f32 %v154, %v607
  %v609 = vpop.f32.mrf.mxu0
  %610 = vmatprep.mubr.f32.mxu0 0.0
  %611 = vmatmul.mubr.f32.gmra.mxu0 %v161
  %v612 = vpop.f32.mrf.mxu0
  %v613 = vadd.f32 %v154, %v612
  %v614 = vpop.f32.mrf.mxu0
  %615 = vmatprep.mubr.f32.mxu0 0.0
  %616 = vmatmul.mubr.f32.gmra.mxu0 %v164
  %v617 = vpop.f32.mrf.mxu0
  %v618 = vadd.f32 %v154, %v617
  %v619 = vpop.f32.mrf.mxu0
  %620 = vmatprep.mubr.f32.mxu0 0.0
  %621 = vmatmul.mubr.f32.gmra.mxu0 %v167
  %v622 = vpop.f32.mrf.mxu0
  %v623 = vadd.f32 %v154, %v622
  %v624 = vpop.f32.mrf.mxu0
  %625 = vmatprep.mubr.f32.mxu0 0.0
  %626 = vmatmul.mubr.f32.gmra.mxu0 %v170
  %v627 = vpop.f32.mrf.mxu0
  %v628 = vadd.f32 %v154, %v627
  %v629 = vpop.f32.mrf.mxu0
  %630 = vmatprep.mubr.f32.mxu0 0.0
  %631 = vmatmul.mubr.f32.gmra.mxu0 %v173
  %v632 = vpop.f32.mrf.mxu0
  %v633 = vadd.f32 %v154, %v632
  %v634 = vpop.f32.mrf.mxu0
  %635 = vmatprep.mubr.f32.mxu0 0.0
  %636 = vmatmul.mubr.f32.gmra.mxu0 %v176
  %v637 = vpop.f32.mrf.mxu0
  %v638 = vadd.f32 %v154, %v637
  %v639 = vpop.f32.mrf.mxu0
  %640 = vmatprep.mubr.f32.mxu0 0.0
  %641 = vmatmul.mubr.f32.gmra.mxu0 %v179
  %v642 = vpop.f32.mrf.mxu0
  %v643 = vadd.f32 %v154, %v642
  %v644 = vpop.f32.mrf.mxu0
  %645 = vmatprep.mubr.f32.mxu0 0.0
  %646 = vmatmul.mubr.f32.gmra.mxu0 %v182
  %v647 = vpop.f32.mrf.mxu0
  %v648 = vadd.f32 %v154, %v647
  %v649 = vpop.f32.mrf.mxu0
  %650 = vmatprep.mubr.f32.mxu0 0.0
  %651 = vmatmul.mubr.f32.gmra.mxu0 %v185
  %v652 = vpop.f32.mrf.mxu0
  %v653 = vadd.f32 %v154, %v652
  %v654 = vpop.f32.mrf.mxu0
  %655 = vmatprep.mubr.f32.mxu0 0.0
  %656 = vmatmul.mubr.f32.gmra.mxu0 %v188
  %v657 = vpop.f32.mrf.mxu0
  %v658 = vadd.f32 %v154, %v657
  %v659 = vpop.f32.mrf.mxu0
  %660 = vmatprep.mubr.f32.mxu0 0.0
  %661 = vmatmul.mubr.f32.gmra.mxu0 %v191
  %v662 = vpop.f32.mrf.mxu0
  %v663 = vadd.f32 %v154, %v662
  %v664 = vpop.f32.mrf.mxu0
  %665 = vmatprep.mubr.f32.mxu0 0.0
  %666 = vmatmul.mubr.f32.gmra.mxu0 %v194
  %v667 = vpop.f32.mrf.mxu0
  %v668 = vadd.f32 %v154, %v667
  %v669 = vpop.f32.mrf.mxu0
  %670 = vmatprep.mubr.f32.mxu0 0.0
  %671 = vmatmul.mubr.f32.gmra.mxu0 %v197
  %v672 = vpop.f32.mrf.mxu0
  %v673 = vadd.f32 %v154, %v672
  %v674 = vpop.f32.mrf.mxu0
  %675 = vmatprep.mubr.f32.mxu0 0.0
  %676 = vmatmul.mubr.f32.gmra.mxu0 %v200
  %v677 = vpop.f32.mrf.mxu0
  %v678 = vadd.f32 %v154, %v677
  %v679 = vpop.f32.mrf.mxu0
  %680 = vmatprep.mubr.f32.mxu0 0.0
  %681 = vmatmul.mubr.f32.gmra.mxu0 %v203
  %v682 = vpop.f32.mrf.mxu0
  %v683 = vadd.f32 %v154, %v682
  %v684 = vpop.f32.mrf.mxu0
  %685 = vmatprep.mubr.f32.mxu0 0.0
  %686 = vmatmul.mubr.f32.gmra.mxu0 %v206
  %v687 = vpop.f32.mrf.mxu0
  %v688 = vadd.f32 %v154, %v687
  %v689 = vpop.f32.mrf.mxu0
  %690 = vmatprep.mubr.f32.mxu0 0.0
  %691 = vmatmul.mubr.f32.gmra.mxu0 %v209
  %v692 = vpop.f32.mrf.mxu0
  %v693 = vadd.f32 %v154, %v692
  %v694 = vpop.f32.mrf.mxu0
  %695 = vmatprep.mubr.f32.mxu0 0.0
  %696 = vmatmul.mubr.f32.gmra.mxu0 %v212
  %v697 = vpop.f32.mrf.mxu0
  %v698 = vadd.f32 %v154, %v697
  %v699 = vpop.f32.mrf.mxu0
  %700 = vmatprep.mubr.f32.mxu0 0.0
  %701 = vmatmul.mubr.f32.gmra.mxu0 %v215
  %v702 = vpop.f32.mrf.mxu0
  %v703 = vadd.f32 %v154, %v702
  %v704 = vpop.f32.mrf.mxu0
  %705 = vmatprep.mubr.f32.mxu0 0.0
  %706 = vmatmul.mubr.f32.gmra.mxu0 %v218
  %v707 = vpop.f32.mrf.mxu0
  %v708 = vadd.f32 %v154, %v707
  %v709 = vpop.f32.mrf.mxu0
  %710 = vmatprep.mubr.f32.mxu0 0.0
  %711 = vmatmul.mubr.f32.gmra.mxu0 %v221
  %v712 = vpop.f32.mrf.mxu0
  %v713 = vadd.f32 %v154, %v712
  %v714 = vpop.f32.mrf.mxu0
  %715 = vmatprep.mubr.f32.mxu0 0.0
  %716 = vmatmul.mubr.f32.gmra.mxu0 %v224
  %v717 = vpop.f32.mrf.mxu0
  %v718 = vadd.f32 %v154, %v717
  %v719 = vpop.f32.mrf.mxu0
  %720 = vmatprep.mubr.f32.mxu0 0.0
  %721 = vmatmul.mubr.f32.gmra.mxu0 %v227
  %v722 = vpop.f32.mrf.mxu0
  %v723 = vadd.f32 %v154, %v722
  %v724 = vpop.f32.mrf.mxu0
  %725 = vmatprep.mubr.f32.mxu0 0.0
  %726 = vmatmul.mubr.f32.gmra.mxu0 %v230
  %v727 = vpop.f32.mrf.mxu0
  %v728 = vadd.f32 %v154, %v727
  %v729 = vpop.f32.mrf.mxu0
  %730 = vmatprep.mubr.f32.mxu0 0.0
  %731 = vmatmul.mubr.f32.gmra.mxu0 %v233
  %v732 = vpop.f32.mrf.mxu0
  %v733 = vadd.f32 %v154, %v732
  %v734 = vpop.f32.mrf.mxu0
  %735 = vmatprep.mubr.f32.mxu0 0.0
  %736 = vmatmul.mubr.f32.gmra.mxu0 %v236
  %v737 = vpop.f32.mrf.mxu0
  %v738 = vadd.f32 %v154, %v737
  %v739 = vpop.f32.mrf.mxu0
  %740 = vmatprep.mubr.f32.mxu0 0.0
  %741 = vmatmul.mubr.f32.gmra.mxu0 %v239
  %v742 = vpop.f32.mrf.mxu0
  %v743 = vadd.f32 %v154, %v742
  %v744 = vpop.f32.mrf.mxu0
  %745 = vmatprep.mubr.f32.mxu0 0.0
  %746 = vmatmul.mubr.f32.gmra.mxu0 %v242
  %v747 = vpop.f32.mrf.mxu0
  %v748 = vadd.f32 %v154, %v747
  %v749 = vpop.f32.mrf.mxu0
  %750 = vmatprep.mubr.f32.mxu0 0.0
  %751 = vmatmul.mubr.f32.gmra.mxu0 %v245
  %v752 = vpop.f32.mrf.mxu0
  %v753 = vadd.f32 %v154, %v752
  %v754 = vpop.f32.mrf.mxu0
  %755 = vmatprep.mubr.f32.mxu0 0.0
  %756 = vmatmul.mubr.f32.gmra.mxu0 %v248
  %v757 = vpop.f32.mrf.mxu0
  %v758 = vadd.f32 %v154, %v757
  %v759 = vpop.f32.mrf.mxu0
  %760 = vmatprep.mubr.f32.mxu0 0.0
  %761 = vmatmul.mubr.f32.gmra.mxu0 %v251
  %v762 = vpop.f32.mrf.mxu0
  %v763 = vadd.f32 %v154, %v762
  %v764 = vpop.f32.mrf.mxu0
  %765 = vmatprep.mubr.f32.mxu0 0.0
  %766 = vmatmul.mubr.f32.gmra.mxu0 %v254
  %v767 = vpop.f32.mrf.mxu0
  %v768 = vadd.f32 %v154, %v767
  %v769 = vpop.f32.mrf.mxu0
  %770 = vmatprep.mubr.f32.mxu0 0.0
  %771 = vmatmul.mubr.f32.gmra.mxu0 %v257
  %v772 = vpop.f32.mrf.mxu0
  %v773 = vadd.f32 %v154, %v772
  %v774 = vpop.f32.mrf.mxu0
  %775 = vmatprep.mubr.f32.mxu0 0.0
  %776 = vmatmul.mubr.f32.gmra.mxu0 %v260
  %v777 = vpop.f32.mrf.mxu0
  %v778 = vadd.f32 %v154, %v777
  %v779 = vpop.f32.mrf.mxu0
  %780 = vmatprep.mubr.f32.mxu0 0.0
  %781 = vmatmul.mubr.f32.gmra.mxu0 %v263
  %v782 = vpop.f32.mrf.mxu0
  %v783 = vadd.f32 %v154, %v782
  %v784 = vpop.f32.mrf.mxu0
  %785 = vmatprep.mubr.f32.mxu0 0.0
  %786 = vmatmul.mubr.f32.gmra.mxu0 %v266
  %v787 = vpop.f32.mrf.mxu0
  %v788 = vadd.f32 %v154, %v787
  %v789 = vpop.f32.mrf.mxu0
  %790 = vmatprep.mubr.f32.mxu0 0.0
  %791 = vmatmul.mubr.f32.gmra.mxu0 %v269
  %v792 = vpop.f32.mrf.mxu0
  %v793 = vadd.f32 %v154, %v792
  %v794 = vpop.f32.mrf.mxu0
  %795 = vmatprep.mubr.f32.mxu0 0.0
  %796 = vmatmul.mubr.f32.gmra.mxu0 %v272
  %v797 = vpop.f32.mrf.mxu0
  %v798 = vadd.f32 %v154, %v797
  %v799 = vpop.f32.mrf.mxu0
  %800 = vmatprep.mubr.f32.mxu0 0.0
  %801 = vmatmul.mubr.f32.gmra.mxu0 %v275
  %v802 = vpop.f32.mrf.mxu0
  %v803 = vadd.f32 %v154, %v802
  %v804 = vpop.f32.mrf.mxu0
  %805 = vmatprep.mubr.f32.mxu0 0.0
  %806 = vmatmul.mubr.f32.gmra.mxu0 %v278
  %v807 = vpop.f32.mrf.mxu0
  %v808 = vadd.f32 %v154, %v807
  %v809 = vpop.f32.mrf.mxu0
  %810 = vmatprep.mubr.f32.mxu0 0.0
  %811 = vmatmul.mubr.f32.gmra.mxu0 %v281
  %v812 = vpop.f32.mrf.mxu0
  %v813 = vadd.f32 %v154, %v812
  %v814 = vpop.f32.mrf.mxu0
  %815 = vmatprep.mubr.f32.mxu0 0.0
  %816 = vmatmul.mubr.f32.gmra.mxu0 %v284
  %v817 = vpop.f32.mrf.mxu0
  %v818 = vadd.f32 %v154, %v817
  %v819 = vpop.f32.mrf.mxu0
  %820 = vmatprep.mubr.f32.mxu0 0.0
  %821 = vmatmul.mubr.f32.gmra.mxu0 %v287
  %v822 = vpop.f32.mrf.mxu0
  %v823 = vadd.f32 %v154, %v822
  %v824 = vpop.f32.mrf.mxu0
  %825 = vmatprep.mubr.f32.mxu0 0.0
  %826 = vmatmul.mubr.f32.gmra.mxu0 %v290
  %v827 = vpop.f32.mrf.mxu0
  %v828 = vadd.f32 %v154, %v827
  %v829 = vpop.f32.mrf.mxu0
  %830 = vmatprep.mubr.f32.mxu0 0.0
  %831 = vmatmul.mubr.f32.gmra.mxu0 %v293
  %v832 = vpop.f32.mrf.mxu0
  %v833 = vadd.f32 %v154, %v832
  %v834 = vpop.f32.mrf.mxu0
  %835 = vmatprep.mubr.f32.mxu0 0.0
  %836 = vmatmul.mubr.f32.gmra.mxu0 %v296
  %v837 = vpop.f32.mrf.mxu0
  %v838 = vadd.f32 %v154, %v837
  %v839 = vpop.f32.mrf.mxu0
  %840 = vmatprep.mubr.f32.mxu0 0.0
  %841 = vmatmul.mubr.f32.gmra.mxu0 %v299
  %v842 = vpop.f32.mrf.mxu0
  %v843 = vadd.f32 %v154, %v842
  %v844 = vpop.f32.mrf.mxu0
  %845 = vmatprep.mubr.f32.mxu0 0.0
  %846 = vmatmul.mubr.f32.gmra.mxu0 %v302
  %v847 = vpop.f32.mrf.mxu0
  %v848 = vadd.f32 %v154, %v847
  %v849 = vpop.f32.mrf.mxu0
  %850 = vmatprep.mubr.f32.mxu0 0.0
  %851 = vmatmul.mubr.f32.gmra.mxu0 %v305
  %v852 = vpop.f32.mrf.mxu0
  %v853 = vadd.f32 %v154, %v852
  %v854 = vpop.f32.mrf.mxu0
  %855 = vmatprep.mubr.f32.mxu0 0.0
  %856 = vmatmul.mubr.f32.gmra.mxu0 %v308
  %v857 = vpop.f32.mrf.mxu0
  %v858 = vadd.f32 %v154, %v857
  %v859 = vpop.f32.mrf.mxu0
  %860 = vmatprep.mubr.f32.mxu0 0.0
  %861 = vmatmul.mubr.f32.gmra.mxu0 %v311
  %v862 = vpop.f32.mrf.mxu0
  %v863 = vadd.f32 %v154, %v862
  %v864 = vpop.f32.mrf.mxu0
  %865 = vmatprep.mubr.f32.mxu0 0.0
  %866 = vmatmul.mubr.f32.gmra.mxu0 %v314
  %v867 = vpop.f32.mrf.mxu0
  %v868 = vadd.f32 %v154, %v867
  %v869 = vpop.f32.mrf.mxu0
  %870 = vmatprep.mubr.f32.mxu0 0.0
  %871 = vmatmul.mubr.f32.gmra.mxu0 %v317
  %v872 = vpop.f32.mrf.mxu0
  %v873 = vadd.f32 %v154, %v872
  %v874 = vpop.f32.mrf.mxu0
  %875 = vmatprep.mubr.f32.mxu0 0.0
  %876 = vmatmul.mubr.f32.gmra.mxu0 %v320
  %v877 = vpop.f32.mrf.mxu0
  %v878 = vadd.f32 %v154, %v877
  %v879 = vpop.f32.mrf.mxu0
  %880 = vmatprep.mubr.f32.mxu0 0.0
  %881 = vmatmul.mubr.f32.gmra.mxu0 %v323
  %v882 = vpop.f32.mrf.mxu0
  %v883 = vadd.f32 %v154, %v882
  %v884 = vpop.f32.mrf.mxu0
  %885 = vmatprep.mubr.f32.mxu0 0.0
  %886 = vmatmul.mubr.f32.gmra.mxu0 %v326
  %v887 = vpop.f32.mrf.mxu0
  %v888 = vadd.f32 %v154, %v887
  %v889 = vpop.f32.mrf.mxu0
  %890 = vmatprep.mubr.f32.mxu0 0.0
  %891 = vmatmul.mubr.f32.gmra.mxu0 %v329
  %v892 = vpop.f32.mrf.mxu0
  %v893 = vadd.f32 %v154, %v892
  %v894 = vpop.f32.mrf.mxu0
  %895 = vmatprep.mubr.f32.mxu0 0.0
  %896 = vmatmul.mubr.f32.gmra.mxu0 %v332
  %v897 = vpop.f32.mrf.mxu0
  %v898 = vadd.f32 %v154, %v897
  %v899 = vpop.f32.mrf.mxu0
  %900 = vmatprep.mubr.f32.mxu0 0.0
  %901 = vmatmul.mubr.f32.gmra.mxu0 %v335
  %v902 = vpop.f32.mrf.mxu0
  %v903 = vadd.f32 %v154, %v902
  %v904 = vpop.f32.mrf.mxu0
  %905 = vmatprep.mubr.f32.mxu0 0.0
  %906 = vmatmul.mubr.f32.gmra.mxu0 %v338
  %v907 = vpop.f32.mrf.mxu0
  %v908 = vadd.f32 %v154, %v907
  %v909 = vpop.f32.mrf.mxu0
  %910 = vmatprep.mubr.f32.mxu0 0.0
  %911 = vmatmul.mubr.f32.gmra.mxu0 %v341
  %v912 = vpop.f32.mrf.mxu0
  %v913 = vadd.f32 %v154, %v912
  %v914 = vpop.f32.mrf.mxu0
  %915 = vmatprep.mubr.f32.mxu0 0.0
  %916 = vmatmul.mubr.f32.gmra.mxu0 %v344
  %v917 = vpop.f32.mrf.mxu0
  %v918 = vadd.f32 %v154, %v917
  %v919 = vpop.f32.mrf.mxu0
  %920 = vmatprep.mubr.f32.mxu0 0.0
  %921 = vmatmul.mubr.f32.gmra.mxu0 %v347
  %v922 = vpop.f32.mrf.mxu0
  %v923 = vadd.f32 %v154, %v922
  %v924 = vpop.f32.mrf.mxu0
  %925 = vmatprep.mubr.f32.mxu0 0.0
  %926 = vmatmul.mubr.f32.gmra.mxu0 %v350
  %v927 = vpop.f32.mrf.mxu0
  %v928 = vadd.f32 %v154, %v927
  %v929 = vpop.f32.mrf.mxu0
  %930 = vmatprep.mubr.f32.mxu0 0.0
  %931 = vmatmul.mubr.f32.gmra.mxu0 %v353
  %v932 = vpop.f32.mrf.mxu0
  %v933 = vadd.f32 %v154, %v932
  %v934 = vpop.f32.mrf.mxu0
  %935 = vmatprep.mubr.f32.mxu0 0.0
  %936 = vmatmul.mubr.f32.gmra.mxu0 %v356
  %v937 = vpop.f32.mrf.mxu0
  %v938 = vadd.f32 %v154, %v937
  %v939 = vpop.f32.mrf.mxu0
  %940 = vmatprep.mubr.f32.mxu0 0.0
  %941 = vmatmul.mubr.f32.gmra.mxu0 %v359
  %v942 = vpop.f32.mrf.mxu0
  %v943 = vadd.f32 %v154, %v942
  %v944 = vpop.f32.mrf.mxu0
  %945 = vmatprep.mubr.f32.mxu0 0.0
  %946 = vmatmul.mubr.f32.gmra.mxu0 %v362
  %v947 = vpop.f32.mrf.mxu0
  %v948 = vadd.f32 %v154, %v947
  %v949 = vpop.f32.mrf.mxu0
  %950 = vmatprep.mubr.f32.mxu0 0.0
  %951 = vmatmul.mubr.f32.gmra.mxu0 %v365
  %v952 = vpop.f32.mrf.mxu0
  %v953 = vadd.f32 %v154, %v952
  %v954 = vpop.f32.mrf.mxu0
  %955 = vmatprep.mubr.f32.mxu0 0.0
  %956 = vmatmul.mubr.f32.gmra.mxu0 %v368
  %v957 = vpop.f32.mrf.mxu0
  %v958 = vadd.f32 %v154, %v957
  %v959 = vpop.f32.mrf.mxu0
  %960 = vmatprep.mubr.f32.mxu0 0.0
  %961 = vmatmul.mubr.f32.gmra.mxu0 %v371
  %v962 = vpop.f32.mrf.mxu0
  %v963 = vadd.f32 %v154, %v962
  %v964 = vpop.f32.mrf.mxu0
  %965 = vmatprep.mubr.f32.mxu0 0.0
  %966 = vmatmul.mubr.f32.gmra.mxu0 %v374
  %v967 = vpop.f32.mrf.mxu0
  %v968 = vadd.f32 %v154, %v967
  %v969 = vpop.f32.mrf.mxu0
  %970 = vmatprep.mubr.f32.mxu0 0.0
  %971 = vmatmul.mubr.f32.gmra.mxu0 %v377
  %v972 = vpop.f32.mrf.mxu0
  %v973 = vadd.f32 %v154, %v972
  %v974 = vpop.f32.mrf.mxu0
  %975 = vmatprep.mubr.f32.mxu0 0.0
  %976 = vmatmul.mubr.f32.gmra.mxu0 %v380
  %v977 = vpop.f32.mrf.mxu0
  %v978 = vadd.f32 %v154, %v977
  %v979 = vpop.f32.mrf.mxu0
  %980 = vmatprep.mubr.f32.mxu0 0.0
  %981 = vmatmul.mubr.f32.gmra.mxu0 %v383
  %v982 = vpop.f32.mrf.mxu0
  %v983 = vadd.f32 %v154, %v982
  %v984 = vpop.f32.mrf.mxu0
  %985 = vmatprep.mubr.f32.mxu0 0.0
  %986 = vmatmul.mubr.f32.gmra.mxu0 %v386
  %v987 = vpop.f32.mrf.mxu0
  %v988 = vadd.f32 %v154, %v987
  %v989 = vpop.f32.mrf.mxu0
  %990 = vmatprep.mubr.f32.mxu0 0.0
  %991 = vmatmul.mubr.f32.gmra.mxu0 %v389
  %v992 = vpop.f32.mrf.mxu0
  %v993 = vadd.f32 %v154, %v992
  %v994 = vpop.f32.mrf.mxu0
  %995 = vmatprep.mubr.f32.mxu0 0.0
  %996 = vmatmul.mubr.f32.gmra.mxu0 %v392
  %v997 = vpop.f32.mrf.mxu0
  %v998 = vadd.f32 %v154, %v997
  %v999 = vpop.f32.mrf.mxu0
  %1000 = vmatprep.mubr.f32.mxu0 0.0
  %1001 = vmatmul.mubr.f32.gmra.mxu0 %v395
  %v1002 = vpop.f32.mrf.mxu0
  %v1003 = vadd.f32 %v154, %v1002
  %v1004 = vpop.f32.mrf.mxu0
  %1005 = vmatprep.mubr.f32.mxu0 0.0
  %1006 = vmatmul.mubr.f32.gmra.mxu0 %v398
  %v1007 = vpop.f32.mrf.mxu0
  %v1008 = vadd.f32 %v154, %v1007
  %v1009 = vpop.f32.mrf.mxu0
  %1010 = vmatprep.mubr.f32.mxu0 0.0
  %1011 = vmatmul.mubr.f32.gmra.mxu0 %v401
  %v1012 = vpop.f32.mrf.mxu0
  %v1013 = vadd.f32 %v154, %v1012
  %v1014 = vpop.f32.mrf.mxu0
  %1015 = vmatprep.mubr.f32.mxu0 0.0
  %1016 = vmatmul.mubr.f32.gmra.mxu0 %v404
  %v1017 = vpop.f32.mrf.mxu0
  %v1018 = vadd.f32 %v154, %v1017
  %v1019 = vpop.f32.mrf.mxu0
  %1020 = vmatprep.mubr.f32.mxu0 0.0
  %1021 = vmatmul.mubr.f32.gmra.mxu0 %v407
  %v1022 = vpop.f32.mrf.mxu0
  %v1023 = vadd.f32 %v154, %v1022
  %v1024 = vpop.f32.mrf.mxu0
  %1025 = vmatprep.mubr.f32.mxu0 0.0
  %1026 = vmatmul.mubr.f32.gmra.mxu0 %v410
  %v1027 = vpop.f32.mrf.mxu0
  %v1028 = vadd.f32 %v154, %v1027
  %v1029 = vpop.f32.mrf.mxu0
  %1030 = vmatprep.mubr.f32.mxu0 0.0
  %1031 = vmatmul.mubr.f32.gmra.mxu0 %v413
  %v1032 = vpop.f32.mrf.mxu0
  %v1033 = vadd.f32 %v154, %v1032
  %v1034 = vpop.f32.mrf.mxu0
  %1035 = vmatprep.mubr.f32.mxu0 0.0
  %1036 = vmatmul.mubr.f32.gmra.mxu0 %v416
  %v1037 = vpop.f32.mrf.mxu0
  %v1038 = vadd.f32 %v154, %v1037
  %v1039 = vpop.f32.mrf.mxu0
  %1040 = vmatprep.mubr.f32.mxu0 0.0
  %1041 = vmatmul.mubr.f32.gmra.mxu0 %v419
  %v1042 = vpop.f32.mrf.mxu0
  %v1043 = vadd.f32 %v154, %v1042
  %v1044 = vpop.f32.mrf.mxu0
  %1045 = vmatprep.mubr.f32.mxu0 0.0
  %1046 = vmatmul.mubr.f32.gmra.mxu0 %v422
  %v1047 = vpop.f32.mrf.mxu0
  %v1048 = vadd.f32 %v154, %v1047
  %v1049 = vpop.f32.mrf.mxu0
  %1050 = vmatprep.mubr.f32.mxu0 0.0
  %1051 = vmatmul.mubr.f32.gmra.mxu0 %v425
  %v1052 = vpop.f32.mrf.mxu0
  %v1053 = vadd.f32 %v154, %v1052
  %v1054 = vpop.f32.mrf.mxu0
  %1055 = vmatprep.mubr.f32.mxu0 0.0
  %1056 = vmatmul.mubr.f32.gmra.mxu0 %v428
  %v1057 = vpop.f32.mrf.mxu0
  %v1058 = vadd.f32 %v154, %v1057
  %v1059 = vpop.f32.mrf.mxu0
  %1060 = vmatprep.mubr.f32.mxu0 0.0
  %1061 = vmatmul.mubr.f32.gmra.mxu0 %v431
  %v1062 = vpop.f32.mrf.mxu0
  %v1063 = vadd.f32 %v154, %v1062
  %v1064 = vpop.f32.mrf.mxu0
  %1065 = vmatprep.mubr.f32.mxu0 0.0
  %1066 = vmatmul.mubr.f32.gmra.mxu0 %v434
  %v1067 = vpop.f32.mrf.mxu0
  %v1068 = vadd.f32 %v154, %v1067
  %v1069 = vpop.f32.mrf.mxu0
  %1070 = vmatprep.mubr.f32.mxu0 0.0
  %1071 = vmatmul.mubr.f32.gmra.mxu0 %v437
  %v1072 = vpop.f32.mrf.mxu0
  %v1073 = vadd.f32 %v154, %v1072
  %v1074 = vpop.f32.mrf.mxu0
  %1075 = vmatprep.mubr.f32.mxu0 0.0
  %1076 = vmatmul.mubr.f32.gmra.mxu0 %v440
  %v1077 = vpop.f32.mrf.mxu0
  %v1078 = vadd.f32 %v154, %v1077
  %v1079 = vpop.f32.mrf.mxu0
  %1080 = vmatprep.mubr.f32.mxu0 0.0
  %1081 = vmatmul.mubr.f32.gmra.mxu0 %v443
  %v1082 = vpop.f32.mrf.mxu0
  %v1083 = vadd.f32 %v154, %v1082
  %v1084 = vpop.f32.mrf.mxu0
  %1085 = vmatprep.mubr.f32.mxu0 0.0
  %1086 = vmatmul.mubr.f32.gmra.mxu0 %v446
  %v1087 = vpop.f32.mrf.mxu0
  %v1088 = vadd.f32 %v154, %v1087
  %v1089 = vpop.f32.mrf.mxu0
  %1090 = vmatprep.mubr.f32.mxu0 0.0
  %1091 = vmatmul.mubr.f32.gmra.mxu0 %v449
  %v1092 = vpop.f32.mrf.mxu0
  %v1093 = vadd.f32 %v154, %v1092
  %v1094 = vpop.f32.mrf.mxu0
  %1095 = vmatprep.mubr.f32.mxu0 0.0
  %1096 = vmatmul.mubr.f32.gmra.mxu0 %v452
  %v1097 = vpop.f32.mrf.mxu0
  %v1098 = vadd.f32 %v154, %v1097
  %v1099 = vpop.f32.mrf.mxu0
  %1100 = vmatprep.mubr.f32.mxu0 0.0
  %1101 = vmatmul.mubr.f32.gmra.mxu0 %v455
  %v1102 = vpop.f32.mrf.mxu0
  %v1103 = vadd.f32 %v154, %v1102
  %v1104 = vpop.f32.mrf.mxu0
  %1105 = vmatprep.mubr.f32.mxu0 0.0
  %1106 = vmatmul.mubr.f32.gmra.mxu0 %v458
  %v1107 = vpop.f32.mrf.mxu0
  %v1108 = vadd.f32 %v154, %v1107
  %v1109 = vpop.f32.mrf.mxu0
  %1110 = vmatprep.mubr.f32.mxu0 0.0
  %1111 = vmatmul.mubr.f32.gmra.mxu0 %v461
  %v1112 = vpop.f32.mrf.mxu0
  %v1113 = vadd.f32 %v154, %v1112
  %v1114 = vpop.f32.mrf.mxu0
  %1115 = vmatprep.mubr.f32.mxu0 0.0
  %1116 = vmatmul.mubr.f32.gmra.mxu0 %v464
  %v1117 = vpop.f32.mrf.mxu0
  %v1118 = vadd.f32 %v154, %v1117
  %v1119 = vpop.f32.mrf.mxu0
  %1120 = vmatprep.mubr.f32.mxu0 0.0
  %1121 = vmatmul.mubr.f32.gmra.mxu0 %v467
  %v1122 = vpop.f32.mrf.mxu0
  %v1123 = vadd.f32 %v154, %v1122
  %v1124 = vpop.f32.mrf.mxu0
  %1125 = vmatprep.mubr.f32.mxu0 0.0
  %1126 = vmatmul.mubr.f32.gmra.mxu0 %v470
  %v1127 = vpop.f32.mrf.mxu0
  %v1128 = vadd.f32 %v154, %v1127
  %v1129 = vpop.f32.mrf.mxu0
  %1130 = vmatprep.mubr.f32.mxu0 0.0
  %1131 = vmatmul.mubr.f32.gmra.mxu0 %v473
  %v1132 = vpop.f32.mrf.mxu0
  %v1133 = vadd.f32 %v154, %v1132
  %v1134 = vpop.f32.mrf.mxu0
  %1135 = vmatprep.mubr.f32.mxu0 0.0
  %1136 = vmatmul.mubr.f32.gmra.mxu0 %v476
  %v1137 = vpop.f32.mrf.mxu0
  %v1138 = vadd.f32 %v154, %v1137
  %v1139 = vpop.f32.mrf.mxu0
  %1140 = vmatprep.mubr.f32.mxu0 0.0
  %1141 = vmatmul.mubr.f32.gmra.mxu0 %v479
  %v1142 = vpop.f32.mrf.mxu0
  %v1143 = vadd.f32 %v154, %v1142
  %v1144 = vpop.f32.mrf.mxu0
  %1145 = vmatprep.mubr.f32.mxu0 0.0
  %1146 = vmatmul.mubr.f32.gmra.mxu0 %v482
  %v1147 = vpop.f32.mrf.mxu0
  %v1148 = vadd.f32 %v154, %v1147
  %v1149 = vpop.f32.mrf.mxu0
  %1150 = vmatprep.mubr.f32.mxu0 0.0
  %1151 = vmatmul.mubr.f32.gmra.mxu0 %v485
  %v1152 = vpop.f32.mrf.mxu0
  %v1153 = vadd.f32 %v154, %v1152
  %v1154 = vpop.f32.mrf.mxu0
  %1155 = vmatprep.mubr.f32.mxu0 0.0
  %1156 = vmatmul.mubr.f32.gmra.mxu0 %v488
  %v1157 = vpop.f32.mrf.mxu0
  %v1158 = vadd.f32 %v154, %v1157
  %v1159 = vpop.f32.mrf.mxu0
  %1160 = vmatprep.mubr.f32.mxu0 0.0
  %1161 = vmatmul.mubr.f32.gmra.mxu0 %v491
  %v1162 = vpop.f32.mrf.mxu0
  %v1163 = vadd.f32 %v154, %v1162
  %v1164 = vpop.f32.mrf.mxu0
  %1165 = vmatprep.mubr.f32.mxu0 0.0
  %1166 = vmatmul.mubr.f32.gmra.mxu0 %v494
  %v1167 = vpop.f32.mrf.mxu0
  %v1168 = vadd.f32 %v154, %v1167
  %v1169 = vpop.f32.mrf.mxu0
  %1170 = vmatprep.mubr.f32.mxu0 0.0
  %1171 = vmatmul.mubr.f32.gmra.mxu0 %v497
  %v1172 = vpop.f32.mrf.mxu0
  %v1173 = vadd.f32 %v154, %v1172
  %v1174 = vpop.f32.mrf.mxu0
  %1175 = vmatprep.mubr.f32.mxu0 0.0
  %1176 = vmatmul.mubr.f32.gmra.mxu0 %v500
  %v1177 = vpop.f32.mrf.mxu0
  %v1178 = vadd.f32 %v154, %v1177
  %v1179 = vpop.f32.mrf.mxu0
  %1180 = vmatprep.mubr.f32.mxu0 0.0
  %1181 = vmatmul.mubr.f32.gmra.mxu0 %v503
  %v1182 = vpop.f32.mrf.mxu0
  %v1183 = vadd.f32 %v154, %v1182
  %v1184 = vpop.f32.mrf.mxu0
  %1185 = vmatprep.mubr.f32.mxu0 0.0
  %1186 = vmatmul.mubr.f32.gmra.mxu0 %v506
  %v1187 = vpop.f32.mrf.mxu0
  %v1188 = vadd.f32 %v154, %v1187
  %v1189 = vpop.f32.mrf.mxu0
  %1190 = vmatprep.mubr.f32.mxu0 0.0
  %1191 = vmatmul.mubr.f32.gmra.mxu0 %v509
  %v1192 = vpop.f32.mrf.mxu0
  %v1193 = vadd.f32 %v154, %v1192
  %v1194 = vpop.f32.mrf.mxu0
  %1195 = vmatprep.mubr.f32.mxu0 0.0
  %1196 = vmatmul.mubr.f32.gmra.mxu0 %v512
  %v1197 = vpop.f32.mrf.mxu0
  %v1198 = vadd.f32 %v154, %v1197
  %v1199 = vpop.f32.mrf.mxu0
  %1200 = vmatprep.mubr.f32.mxu0 0.0
  %1201 = vmatmul.mubr.f32.gmra.mxu0 %v515
  %v1202 = vpop.f32.mrf.mxu0
  %v1203 = vadd.f32 %v154, %v1202
  %v1204 = vpop.f32.mrf.mxu0
  %1205 = vmatprep.mubr.f32.mxu0 0.0
  %1206 = vmatmul.mubr.f32.gmra.mxu0 %v518
  %v1207 = vpop.f32.mrf.mxu0
  %v1208 = vadd.f32 %v154, %v1207
  %v1209 = vpop.f32.mrf.mxu0
  %1210 = vmatprep.mubr.f32.mxu0 0.0
  %1211 = vmatmul.mubr.f32.gmra.mxu0 %v521
  %v1212 = vpop.f32.mrf.mxu0
  %v1213 = vadd.f32 %v154, %v1212
  %v1214 = vpop.f32.mrf.mxu0
  %1215 = vmatprep.mubr.f32.mxu0 0.0
  %1216 = vmatmul.mubr.f32.gmra.mxu0 %v524
  %v1217 = vpop.f32.mrf.mxu0
  %v1218 = vadd.f32 %v154, %v1217
  %v1219 = vpop.f32.mrf.mxu0
  %1220 = vmatprep.mubr.f32.mxu0 0.0
  %1221 = vmatmul.mubr.f32.gmra.mxu0 %v527
  %v1222 = vpop.f32.mrf.mxu0
  %v1223 = vadd.f32 %v154, %v1222
  %v1224 = vpop.f32.mrf.mxu0
  %1225 = vmatprep.mubr.f32.mxu0 0.0
  %1226 = vmatmul.mubr.f32.gmra.mxu0 %v530
  %v1227 = vpop.f32.mrf.mxu0
  %v1228 = vadd.f32 %v154, %v1227
  %v1229 = vpop.f32.mrf.mxu0
  %1230 = vmatprep.mubr.f32.mxu0 0.0
  %1231 = vmatmul.mubr.f32.gmra.mxu0 %v533
  %v1232 = vpop.f32.mrf.mxu0
  %v1233 = vadd.f32 %v154, %v1232
  %v1234 = vpop.f32.mrf.mxu0
  %1235 = vmatprep.mubr.f32.mxu0 0.0
  %1236 = vmatmul.mubr.f32.gmra.mxu0 %v536
  %v1237 = vpop.f32.mrf.mxu0
  %v1238 = vadd.f32 %v154, %v1237
  %v1239 = vpop.f32.mrf.mxu0
  %1240 = vmatprep.mubr.f32.mxu0 0.0
  %1241 = vmatmul.mubr.f32.gmra.mxu0 %v539
  %v1242 = vpop.f32.mrf.mxu0
  %v1243 = vadd.f32 %v154, %v1242
  %v1244 = vpop.f32.mrf.mxu0
  %1245 = vdwg.mxu0
  %v1246 = vmax.f32 %v608, 0.0
  %v1247 = vmax.f32 %v613, 0.0
  %v1248 = vmax.f32 %v618, 0.0
  %v1249 = vmax.f32 %v623, 0.0
  %v1250 = vmax.f32 %v628, 0.0
  %v1251 = vmax.f32 %v633, 0.0
  %v1252 = vmax.f32 %v638, 0.0
  %v1253 = vmax.f32 %v643, 0.0
  %v1254 = vmax.f32 %v648, 0.0
  %v1255 = vmax.f32 %v653, 0.0
  %v1256 = vmax.f32 %v658, 0.0
  %v1257 = vmax.f32 %v663, 0.0
  %v1258 = vmax.f32 %v668, 0.0
  %v1259 = vmax.f32 %v673, 0.0
  %v1260 = vmax.f32 %v678, 0.0
  %v1261 = vmax.f32 %v683, 0.0
  %v1262 = vmax.f32 %v688, 0.0
  %v1263 = vmax.f32 %v693, 0.0
  %v1264 = vmax.f32 %v698, 0.0
  %v1265 = vmax.f32 %v703, 0.0
  %v1266 = vmax.f32 %v708, 0.0
  %v1267 = vmax.f32 %v713, 0.0
  %v1268 = vmax.f32 %v718, 0.0
  %v1269 = vmax.f32 %v723, 0.0
  %v1270 = vmax.f32 %v728, 0.0
  %v1271 = vmax.f32 %v733, 0.0
  %v1272 = vmax.f32 %v738, 0.0
  %v1273 = vmax.f32 %v743, 0.0
  %v1274 = vmax.f32 %v748, 0.0
  %v1275 = vmax.f32 %v753, 0.0
  %v1276 = vmax.f32 %v758, 0.0
  %v1277 = vmax.f32 %v763, 0.0
  %v1278 = vmax.f32 %v768, 0.0
  %v1279 = vmax.f32 %v773, 0.0
  %v1280 = vmax.f32 %v778, 0.0
  %v1281 = vmax.f32 %v783, 0.0
  %v1282 = vmax.f32 %v788, 0.0
  %v1283 = vmax.f32 %v793, 0.0
  %v1284 = vmax.f32 %v798, 0.0
  %v1285 = vmax.f32 %v803, 0.0
  %v1286 = vmax.f32 %v808, 0.0
  %v1287 = vmax.f32 %v813, 0.0
  %v1288 = vmax.f32 %v818, 0.0
  %v1289 = vmax.f32 %v823, 0.0
  %v1290 = vmax.f32 %v828, 0.0
  %v1291 = vmax.f32 %v833, 0.0
  %v1292 = vmax.f32 %v838, 0.0
  %v1293 = vmax.f32 %v843, 0.0
  %v1294 = vmax.f32 %v848, 0.0
  %v1295 = vmax.f32 %v853, 0.0
  %v1296 = vmax.f32 %v858, 0.0
  %v1297 = vmax.f32 %v863, 0.0
  %v1298 = vmax.f32 %v868, 0.0
  %v1299 = vmax.f32 %v873, 0.0
  %v1300 = vmax.f32 %v878, 0.0
  %v1301 = vmax.f32 %v883, 0.0
  %v1302 = vmax.f32 %v888, 0.0
  %v1303 = vmax.f32 %v893, 0.0
  %v1304 = vmax.f32 %v898, 0.0
  %v1305 = vmax.f32 %v903, 0.0
  %v1306 = vmax.f32 %v908, 0.0
  %v1307 = vmax.f32 %v913, 0.0
  %v1308 = vmax.f32 %v918, 0.0
  %v1309 = vmax.f32 %v923, 0.0
  %v1310 = vmax.f32 %v928, 0.0
  %v1311 = vmax.f32 %v933, 0.0
  %v1312 = vmax.f32 %v938, 0.0
  %v1313 = vmax.f32 %v943, 0.0
  %v1314 = vmax.f32 %v948, 0.0
  %v1315 = vmax.f32 %v953, 0.0
  %v1316 = vmax.f32 %v958, 0.0
  %v1317 = vmax.f32 %v963, 0.0
  %v1318 = vmax.f32 %v968, 0.0
  %v1319 = vmax.f32 %v973, 0.0
  %v1320 = vmax.f32 %v978, 0.0
  %v1321 = vmax.f32 %v983, 0.0
  %v1322 = vmax.f32 %v988, 0.0
  %v1323 = vmax.f32 %v993, 0.0
  %v1324 = vmax.f32 %v998, 0.0
  %v1325 = vmax.f32 %v1003, 0.0
  %v1326 = vmax.f32 %v1008, 0.0
  %v1327 = vmax.f32 %v1013, 0.0
  %v1328 = vmax.f32 %v1018, 0.0
  %v1329 = vmax.f32 %v1023, 0.0
  %v1330 = vmax.f32 %v1028, 0.0
  %v1331 = vmax.f32 %v1033, 0.0
  %v1332 = vmax.f32 %v1038, 0.0
  %v1333 = vmax.f32 %v1043, 0.0
  %v1334 = vmax.f32 %v1048, 0.0
  %v1335 = vmax.f32 %v1053, 0.0
  %v1336 = vmax.f32 %v1058, 0.0
  %v1337 = vmax.f32 %v1063, 0.0
  %v1338 = vmax.f32 %v1068, 0.0
  %v1339 = vmax.f32 %v1073, 0.0
  %v1340 = vmax.f32 %v1078, 0.0
  %v1341 = vmax.f32 %v1083, 0.0
  %v1342 = vmax.f32 %v1088, 0.0
  %v1343 = vmax.f32 %v1093, 0.0
  %v1344 = vmax.f32 %v1098, 0.0
  %v1345 = vmax.f32 %v1103, 0.0
  %v1346 = vmax.f32 %v1108, 0.0
  %v1347 = vmax.f32 %v1113, 0.0
  %v1348 = vmax.f32 %v1118, 0.0
  %v1349 = vmax.f32 %v1123, 0.0
  %v1350 = vmax.f32 %v1128, 0.0
  %v1351 = vmax.f32 %v1133, 0.0
  %v1352 = vmax.f32 %v1138, 0.0
  %v1353 = vmax.f32 %v1143, 0.0
  %v1354 = vmax.f32 %v1148, 0.0
  %v1355 = vmax.f32 %v1153, 0.0
  %v1356 = vmax.f32 %v1158, 0.0
  %v1357 = vmax.f32 %v1163, 0.0
  %v1358 = vmax.f32 %v1168, 0.0
  %v1359 = vmax.f32 %v1173, 0.0
  %v1360 = vmax.f32 %v1178, 0.0
  %v1361 = vmax.f32 %v1183, 0.0
  %v1362 = vmax.f32 %v1188, 0.0
  %v1363 = vmax.f32 %v1193, 0.0
  %v1364 = vmax.f32 %v1198, 0.0
  %v1365 = vmax.f32 %v1203, 0.0
  %v1366 = vmax.f32 %v1208, 0.0
  %v1367 = vmax.f32 %v1213, 0.0
  %v1368 = vmax.f32 %v1218, 0.0
  %v1369 = vmax.f32 %v1223, 0.0
  %v1370 = vmax.f32 %v1228, 0.0
  %v1371 = vmax.f32 %v1233, 0.0
  %v1372 = vmax.f32 %v1238, 0.0
  %v1373 = vmax.f32 %v1243, 0.0
  %v1374 = vld [vmem:[%s3] sm:$0xff]
  %v1375 = vld [vmem:[%s3 + $0x8] sm:$0xff]
  %v1376 = vld [vmem:[%s3 + $0x10] sm:$0xff]
  %v1377 = vld [vmem:[%s3 + $0x18] sm:$0xff]
  %v1378 = vld [vmem:[%s3 + $0x20] sm:$0xff]
  %v1379 = vld [vmem:[%s3 + $0x28] sm:$0xff]
  %v1380 = vld [vmem:[%s3 + $0x30] sm:$0xff]
  %v1381 = vld [vmem:[%s3 + $0x38] sm:$0xff]
  %v1382 = vld [vmem:[%s4] sm:$0x1]
  %v1384 = vlaneseq
  %v1385 = vshrl.u32 %v1384, 7
  %v1386 = vsub.s32 0, %v1385
  %v1387 = vrot.slane %v1382, %v1386
  %vm1389 = vcmask 523264
  %v1391 = vsel %vm1389, %v1246, 0
  %v1394 = vsel %vm1389, %v1247, 0
  %v1397 = vsel %vm1389, %v1248, 0
  %v1400 = vsel %vm1389, %v1249, 0
  %v1403 = vsel %vm1389, %v1250, 0
  %v1406 = vsel %vm1389, %v1251, 0
  %v1409 = vsel %vm1389, %v1252, 0
  %v1412 = vsel %vm1389, %v1253, 0
  %v1415 = vsel %vm1389, %v1254, 0
  %v1418 = vsel %vm1389, %v1255, 0
  %v1421 = vsel %vm1389, %v1256, 0
  %v1424 = vsel %vm1389, %v1257, 0
  %v1427 = vsel %vm1389, %v1258, 0
  %v1430 = vsel %vm1389, %v1259, 0
  %v1433 = vsel %vm1389, %v1260, 0
  %v1436 = vsel %vm1389, %v1261, 0
  %v1439 = vsel %vm1389, %v1262, 0
  %v1442 = vsel %vm1389, %v1263, 0
  %v1445 = vsel %vm1389, %v1264, 0
  %v1448 = vsel %vm1389, %v1265, 0
  %v1451 = vsel %vm1389, %v1266, 0
  %v1454 = vsel %vm1389, %v1267, 0
  %v1457 = vsel %vm1389, %v1268, 0
  %v1460 = vsel %vm1389, %v1269, 0
  %v1463 = vsel %vm1389, %v1270, 0
  %v1466 = vsel %vm1389, %v1271, 0
  %v1469 = vsel %vm1389, %v1272, 0
  %v1472 = vsel %vm1389, %v1273, 0
  %v1475 = vsel %vm1389, %v1274, 0
  %v1478 = vsel %vm1389, %v1275, 0
  %v1481 = vsel %vm1389, %v1276, 0
  %v1484 = vsel %vm1389, %v1277, 0
  %v1487 = vsel %vm1389, %v1278, 0
  %v1490 = vsel %vm1389, %v1279, 0
  %v1493 = vsel %vm1389, %v1280, 0
  %v1496 = vsel %vm1389, %v1281, 0
  %v1499 = vsel %vm1389, %v1282, 0
  %v1502 = vsel %vm1389, %v1283, 0
  %v1505 = vsel %vm1389, %v1284, 0
  %v1508 = vsel %vm1389, %v1285, 0
  %v1511 = vsel %vm1389, %v1286, 0
  %v1514 = vsel %vm1389, %v1287, 0
  %v1517 = vsel %vm1389, %v1288, 0
  %v1520 = vsel %vm1389, %v1289, 0
  %v1523 = vsel %vm1389, %v1290, 0
  %v1526 = vsel %vm1389, %v1291, 0
  %v1529 = vsel %vm1389, %v1292, 0
  %v1532 = vsel %vm1389, %v1293, 0
  %v1535 = vsel %vm1389, %v1294, 0
  %v1538 = vsel %vm1389, %v1295, 0
  %v1541 = vsel %vm1389, %v1296, 0
  %v1544 = vsel %vm1389, %v1297, 0
  %v1547 = vsel %vm1389, %v1298, 0
  %v1550 = vsel %vm1389, %v1299, 0
  %v1553 = vsel %vm1389, %v1300, 0
  %v1556 = vsel %vm1389, %v1301, 0
  %v1559 = vsel %vm1389, %v1302, 0
  %v1562 = vsel %vm1389, %v1303, 0
  %v1565 = vsel %vm1389, %v1304, 0
  %v1568 = vsel %vm1389, %v1305, 0
  %v1571 = vsel %vm1389, %v1306, 0
  %v1574 = vsel %vm1389, %v1307, 0
  %v1577 = vsel %vm1389, %v1308, 0
  %v1580 = vsel %vm1389, %v1309, 0
  %v1583 = vsel %vm1389, %v1310, 0
  %v1586 = vsel %vm1389, %v1311, 0
  %v1589 = vsel %vm1389, %v1312, 0
  %v1592 = vsel %vm1389, %v1313, 0
  %v1595 = vsel %vm1389, %v1314, 0
  %v1598 = vsel %vm1389, %v1315, 0
  %v1601 = vsel %vm1389, %v1316, 0
  %v1604 = vsel %vm1389, %v1317, 0
  %v1607 = vsel %vm1389, %v1318, 0
  %v1610 = vsel %vm1389, %v1319, 0
  %v1613 = vsel %vm1389, %v1320, 0
  %v1616 = vsel %vm1389, %v1321, 0
  %v1619 = vsel %vm1389, %v1322, 0
  %v1622 = vsel %vm1389, %v1323, 0
  %v1625 = vsel %vm1389, %v1324, 0
  %v1628 = vsel %vm1389, %v1325, 0
  %v1631 = vsel %vm1389, %v1326, 0
  %v1634 = vsel %vm1389, %v1327, 0
  %v1637 = vsel %vm1389, %v1328, 0
  %v1640 = vsel %vm1389, %v1329, 0
  %v1643 = vsel %vm1389, %v1330, 0
  %v1646 = vsel %vm1389, %v1331, 0
  %v1649 = vsel %vm1389, %v1332, 0
  %v1652 = vsel %vm1389, %v1333, 0
  %v1655 = vsel %vm1389, %v1334, 0
  %v1658 = vsel %vm1389, %v1335, 0
  %v1661 = vsel %vm1389, %v1336, 0
  %v1664 = vsel %vm1389, %v1337, 0
  %v1667 = vsel %vm1389, %v1338, 0
  %v1670 = vsel %vm1389, %v1339, 0
  %v1673 = vsel %vm1389, %v1340, 0
  %v1676 = vsel %vm1389, %v1341, 0
  %v1679 = vsel %vm1389, %v1342, 0
  %v1682 = vsel %vm1389, %v1343, 0
  %v1685 = vsel %vm1389, %v1344, 0
  %v1688 = vsel %vm1389, %v1345, 0
  %v1691 = vsel %vm1389, %v1346, 0
  %v1694 = vsel %vm1389, %v1347, 0
  %v1697 = vsel %vm1389, %v1348, 0
  %v1700 = vsel %vm1389, %v1349, 0
  %v1703 = vsel %vm1389, %v1350, 0
  %v1706 = vsel %vm1389, %v1351, 0
  %v1709 = vsel %vm1389, %v1352, 0
  %v1712 = vsel %vm1389, %v1353, 0
  %v1715 = vsel %vm1389, %v1354, 0
  %v1718 = vsel %vm1389, %v1355, 0
  %v1721 = vsel %vm1389, %v1356, 0
  %v1724 = vsel %vm1389, %v1357, 0
  %v1727 = vsel %vm1389, %v1358, 0
  %v1730 = vsel %vm1389, %v1359, 0
  %v1733 = vsel %vm1389, %v1360, 0
  %v1736 = vsel %vm1389, %v1361, 0
  %v1739 = vsel %vm1389, %v1362, 0
  %v1742 = vsel %vm1389, %v1363, 0
  %v1745 = vsel %vm1389, %v1364, 0
  %v1748 = vsel %vm1389, %v1365, 0
  %v1751 = vsel %vm1389, %v1366, 0
  %v1754 = vsel %vm1389, %v1367, 0
  %v1757 = vsel %vm1389, %v1368, 0
  %v1760 = vsel %vm1389, %v1369, 0
  %v1763 = vsel %vm1389, %v1370, 0
  %v1766 = vsel %vm1389, %v1371, 0
  %v1769 = vsel %vm1389, %v1372, 0
  %v1772 = vsel %vm1389, %v1373, 0
  %1774 = vmatprep.subr.mxu0 0.0
  %1775 = vmatpush1.msra.mxu0 0.0
  %1776 = vmatprep.subr.mxu0 0.0
  %1777 = vmatpush1.msra.mxu0 0.0
  %1778 = vmatprep.subr.mxu0 0.0
  %1779 = vmatpush1.msra.mxu0 0.0
  %1780 = vmatprep.subr.mxu0 0.0
  %1781 = vmatpush1.msra.mxu0 0.0
  %1782 = vmatprep.subr.mxu0 0.0
  %1783 = vmatpush1.msra.mxu0 0.0
  %1784 = vmatprep.subr.mxu0 0.0
  %1785 = vmatpush1.msra.mxu0 0.0
  %1786 = vmatprep.subr.mxu0 0.0
  %1787 = vmatpush1.msra.mxu0 0.0
  %1788 = vmatprep.subr.mxu0 0.0
  %1789 = vmatpush1.msra.mxu0 0.0
  %1790 = vmatprep.subr.mxu0 0.0
  %1791 = vmatpush1.msra.mxu0 %v1381
  %1792 = vmatprep.subr.mxu0 0.0
  %1793 = vmatpush1.msra.mxu0 %v1380
  %1794 = vmatprep.subr.mxu0 0.0
  %1795 = vmatpush1.msra.mxu0 %v1379
  %1796 = vmatprep.subr.mxu0 0.0
  %1797 = vmatpush1.msra.mxu0 %v1378
  %1798 = vmatprep.subr.mxu0 0.0
  %1799 = vmatpush1.msra.mxu0 %v1377
  %1800 = vmatprep.subr.mxu0 0.0
  %1801 = vmatpush1.msra.mxu0 %v1376
  %1802 = vmatprep.subr.mxu0 0.0
  %1803 = vmatpush1.msra.mxu0 %v1375
  %1804 = vmatprep.subr.mxu0 0.0
  %1805 = vmatpush1.msra.mxu0 %v1374
  %1806 = vmatprep.subr.mxu0 0.0
  %1807 = vmatpush2.msra.mxu0 0.0
  %1808 = vmatprep.subr.mxu0 0.0
  %1809 = vmatpush2.msra.mxu0 0.0
  %1810 = vmatprep.subr.mxu0 0.0
  %1811 = vmatpush2.msra.mxu0 0.0
  %1812 = vmatprep.subr.mxu0 0.0
  %1813 = vmatpush2.msra.mxu0 0.0
  %1814 = vmatprep.subr.mxu0 0.0
  %1815 = vmatpush2.msra.mxu0 0.0
  %1816 = vmatprep.subr.mxu0 0.0
  %1817 = vmatpush2.msra.mxu0 0.0
  %1818 = vmatprep.subr.mxu0 0.0
  %1819 = vmatpush2.msra.mxu0 0.0
  %1820 = vmatprep.subr.mxu0 0.0
  %1821 = vmatpush2.msra.mxu0 0.0
  %1822 = vmatprep.subr.mxu0 0.0
  %1823 = vmatpush2.msra.mxu0 0.0
  %1824 = vmatprep.subr.mxu0 0.0
  %1825 = vmatpush2.msra.mxu0 0.0
  %1826 = vmatprep.subr.mxu0 0.0
  %1827 = vmatpush2.msra.mxu0 0.0
  %1828 = vmatprep.subr.mxu0 0.0
  %1829 = vmatpush2.msra.mxu0 0.0
  %1830 = vmatprep.subr.mxu0 0.0
  %1831 = vmatpush2.msra.mxu0 0.0
  %1832 = vmatprep.subr.mxu0 0.0
  %1833 = vmatpush2.msra.mxu0 0.0
  %1834 = vmatprep.subr.mxu0 0.0
  %1835 = vmatpush2.msra.mxu0 0.0
  %1836 = vmatprep.subr.mxu0 0.0
  %1837 = vmatpush2.msra.mxu0 0.0
  %1838 = vmatprep.mubr.f32.mxu0 0.0
  %1839 = vmatmul.mubr.f32.gmra.mxu0 %v1391
  %v1840 = vpop.f32.mrf.mxu0
  %v1841 = vadd.f32 %v1387, %v1840
  %v1842 = vpop.f32.mrf.mxu0
  %1843 = vmatprep.mubr.f32.mxu0 0.0
  %1844 = vmatmul.mubr.f32.gmra.mxu0 %v1394
  %v1845 = vpop.f32.mrf.mxu0
  %v1846 = vadd.f32 %v1387, %v1845
  %v1847 = vpop.f32.mrf.mxu0
  %1848 = vmatprep.mubr.f32.mxu0 0.0
  %1849 = vmatmul.mubr.f32.gmra.mxu0 %v1397
  %v1850 = vpop.f32.mrf.mxu0
  %v1851 = vadd.f32 %v1387, %v1850
  %v1852 = vpop.f32.mrf.mxu0
  %1853 = vmatprep.mubr.f32.mxu0 0.0
  %1854 = vmatmul.mubr.f32.gmra.mxu0 %v1400
  %v1855 = vpop.f32.mrf.mxu0
  %v1856 = vadd.f32 %v1387, %v1855
  %v1857 = vpop.f32.mrf.mxu0
  %1858 = vmatprep.mubr.f32.mxu0 0.0
  %1859 = vmatmul.mubr.f32.gmra.mxu0 %v1403
  %v1860 = vpop.f32.mrf.mxu0
  %v1861 = vadd.f32 %v1387, %v1860
  %v1862 = vpop.f32.mrf.mxu0
  %1863 = vmatprep.mubr.f32.mxu0 0.0
  %1864 = vmatmul.mubr.f32.gmra.mxu0 %v1406
  %v1865 = vpop.f32.mrf.mxu0
  %v1866 = vadd.f32 %v1387, %v1865
  %v1867 = vpop.f32.mrf.mxu0
  %1868 = vmatprep.mubr.f32.mxu0 0.0
  %1869 = vmatmul.mubr.f32.gmra.mxu0 %v1409
  %v1870 = vpop.f32.mrf.mxu0
  %v1871 = vadd.f32 %v1387, %v1870
  %v1872 = vpop.f32.mrf.mxu0
  %1873 = vmatprep.mubr.f32.mxu0 0.0
  %1874 = vmatmul.mubr.f32.gmra.mxu0 %v1412
  %v1875 = vpop.f32.mrf.mxu0
  %v1876 = vadd.f32 %v1387, %v1875
  %v1877 = vpop.f32.mrf.mxu0
  %1878 = vmatprep.mubr.f32.mxu0 0.0
  %1879 = vmatmul.mubr.f32.gmra.mxu0 %v1415
  %v1880 = vpop.f32.mrf.mxu0
  %v1881 = vadd.f32 %v1387, %v1880
  %v1882 = vpop.f32.mrf.mxu0
  %1883 = vmatprep.mubr.f32.mxu0 0.0
  %1884 = vmatmul.mubr.f32.gmra.mxu0 %v1418
  %v1885 = vpop.f32.mrf.mxu0
  %v1886 = vadd.f32 %v1387, %v1885
  %v1887 = vpop.f32.mrf.mxu0
  %1888 = vmatprep.mubr.f32.mxu0 0.0
  %1889 = vmatmul.mubr.f32.gmra.mxu0 %v1421
  %v1890 = vpop.f32.mrf.mxu0
  %v1891 = vadd.f32 %v1387, %v1890
  %v1892 = vpop.f32.mrf.mxu0
  %1893 = vmatprep.mubr.f32.mxu0 0.0
  %1894 = vmatmul.mubr.f32.gmra.mxu0 %v1424
  %v1895 = vpop.f32.mrf.mxu0
  %v1896 = vadd.f32 %v1387, %v1895
  %v1897 = vpop.f32.mrf.mxu0
  %1898 = vmatprep.mubr.f32.mxu0 0.0
  %1899 = vmatmul.mubr.f32.gmra.mxu0 %v1427
  %v1900 = vpop.f32.mrf.mxu0
  %v1901 = vadd.f32 %v1387, %v1900
  %v1902 = vpop.f32.mrf.mxu0
  %1903 = vmatprep.mubr.f32.mxu0 0.0
  %1904 = vmatmul.mubr.f32.gmra.mxu0 %v1430
  %v1905 = vpop.f32.mrf.mxu0
  %v1906 = vadd.f32 %v1387, %v1905
  %v1907 = vpop.f32.mrf.mxu0
  %1908 = vmatprep.mubr.f32.mxu0 0.0
  %1909 = vmatmul.mubr.f32.gmra.mxu0 %v1433
  %v1910 = vpop.f32.mrf.mxu0
  %v1911 = vadd.f32 %v1387, %v1910
  %v1912 = vpop.f32.mrf.mxu0
  %1913 = vmatprep.mubr.f32.mxu0 0.0
  %1914 = vmatmul.mubr.f32.gmra.mxu0 %v1436
  %v1915 = vpop.f32.mrf.mxu0
  %v1916 = vadd.f32 %v1387, %v1915
  %v1917 = vpop.f32.mrf.mxu0
  %1918 = vmatprep.mubr.f32.mxu0 0.0
  %1919 = vmatmul.mubr.f32.gmra.mxu0 %v1439
  %v1920 = vpop.f32.mrf.mxu0
  %v1921 = vadd.f32 %v1387, %v1920
  %v1922 = vpop.f32.mrf.mxu0
  %1923 = vmatprep.mubr.f32.mxu0 0.0
  %1924 = vmatmul.mubr.f32.gmra.mxu0 %v1442
  %v1925 = vpop.f32.mrf.mxu0
  %v1926 = vadd.f32 %v1387, %v1925
  %v1927 = vpop.f32.mrf.mxu0
  %1928 = vmatprep.mubr.f32.mxu0 0.0
  %1929 = vmatmul.mubr.f32.gmra.mxu0 %v1445
  %v1930 = vpop.f32.mrf.mxu0
  %v1931 = vadd.f32 %v1387, %v1930
  %v1932 = vpop.f32.mrf.mxu0
  %1933 = vmatprep.mubr.f32.mxu0 0.0
  %1934 = vmatmul.mubr.f32.gmra.mxu0 %v1448
  %v1935 = vpop.f32.mrf.mxu0
  %v1936 = vadd.f32 %v1387, %v1935
  %v1937 = vpop.f32.mrf.mxu0
  %1938 = vmatprep.mubr.f32.mxu0 0.0
  %1939 = vmatmul.mubr.f32.gmra.mxu0 %v1451
  %v1940 = vpop.f32.mrf.mxu0
  %v1941 = vadd.f32 %v1387, %v1940
  %v1942 = vpop.f32.mrf.mxu0
  %1943 = vmatprep.mubr.f32.mxu0 0.0
  %1944 = vmatmul.mubr.f32.gmra.mxu0 %v1454
  %v1945 = vpop.f32.mrf.mxu0
  %v1946 = vadd.f32 %v1387, %v1945
  %v1947 = vpop.f32.mrf.mxu0
  %1948 = vmatprep.mubr.f32.mxu0 0.0
  %1949 = vmatmul.mubr.f32.gmra.mxu0 %v1457
  %v1950 = vpop.f32.mrf.mxu0
  %v1951 = vadd.f32 %v1387, %v1950
  %v1952 = vpop.f32.mrf.mxu0
  %1953 = vmatprep.mubr.f32.mxu0 0.0
  %1954 = vmatmul.mubr.f32.gmra.mxu0 %v1460
  %v1955 = vpop.f32.mrf.mxu0
  %v1956 = vadd.f32 %v1387, %v1955
  %v1957 = vpop.f32.mrf.mxu0
  %1958 = vmatprep.mubr.f32.mxu0 0.0
  %1959 = vmatmul.mubr.f32.gmra.mxu0 %v1463
  %v1960 = vpop.f32.mrf.mxu0
  %v1961 = vadd.f32 %v1387, %v1960
  %v1962 = vpop.f32.mrf.mxu0
  %1963 = vmatprep.mubr.f32.mxu0 0.0
  %1964 = vmatmul.mubr.f32.gmra.mxu0 %v1466
  %v1965 = vpop.f32.mrf.mxu0
  %v1966 = vadd.f32 %v1387, %v1965
  %v1967 = vpop.f32.mrf.mxu0
  %1968 = vmatprep.mubr.f32.mxu0 0.0
  %1969 = vmatmul.mubr.f32.gmra.mxu0 %v1469
  %v1970 = vpop.f32.mrf.mxu0
  %v1971 = vadd.f32 %v1387, %v1970
  %v1972 = vpop.f32.mrf.mxu0
  %1973 = vmatprep.mubr.f32.mxu0 0.0
  %1974 = vmatmul.mubr.f32.gmra.mxu0 %v1472
  %v1975 = vpop.f32.mrf.mxu0
  %v1976 = vadd.f32 %v1387, %v1975
  %v1977 = vpop.f32.mrf.mxu0
  %1978 = vmatprep.mubr.f32.mxu0 0.0
  %1979 = vmatmul.mubr.f32.gmra.mxu0 %v1475
  %v1980 = vpop.f32.mrf.mxu0
  %v1981 = vadd.f32 %v1387, %v1980
  %v1982 = vpop.f32.mrf.mxu0
  %1983 = vmatprep.mubr.f32.mxu0 0.0
  %1984 = vmatmul.mubr.f32.gmra.mxu0 %v1478
  %v1985 = vpop.f32.mrf.mxu0
  %v1986 = vadd.f32 %v1387, %v1985
  %v1987 = vpop.f32.mrf.mxu0
  %1988 = vmatprep.mubr.f32.mxu0 0.0
  %1989 = vmatmul.mubr.f32.gmra.mxu0 %v1481
  %v1990 = vpop.f32.mrf.mxu0
  %v1991 = vadd.f32 %v1387, %v1990
  %v1992 = vpop.f32.mrf.mxu0
  %1993 = vmatprep.mubr.f32.mxu0 0.0
  %1994 = vmatmul.mubr.f32.gmra.mxu0 %v1484
  %v1995 = vpop.f32.mrf.mxu0
  %v1996 = vadd.f32 %v1387, %v1995
  %v1997 = vpop.f32.mrf.mxu0
  %1998 = vmatprep.mubr.f32.mxu0 0.0
  %1999 = vmatmul.mubr.f32.gmra.mxu0 %v1487
  %v2000 = vpop.f32.mrf.mxu0
  %v2001 = vadd.f32 %v1387, %v2000
  %v2002 = vpop.f32.mrf.mxu0
  %2003 = vmatprep.mubr.f32.mxu0 0.0
  %2004 = vmatmul.mubr.f32.gmra.mxu0 %v1490
  %v2005 = vpop.f32.mrf.mxu0
  %v2006 = vadd.f32 %v1387, %v2005
  %v2007 = vpop.f32.mrf.mxu0
  %2008 = vmatprep.mubr.f32.mxu0 0.0
  %2009 = vmatmul.mubr.f32.gmra.mxu0 %v1493
  %v2010 = vpop.f32.mrf.mxu0
  %v2011 = vadd.f32 %v1387, %v2010
  %v2012 = vpop.f32.mrf.mxu0
  %2013 = vmatprep.mubr.f32.mxu0 0.0
  %2014 = vmatmul.mubr.f32.gmra.mxu0 %v1496
  %v2015 = vpop.f32.mrf.mxu0
  %v2016 = vadd.f32 %v1387, %v2015
  %v2017 = vpop.f32.mrf.mxu0
  %2018 = vmatprep.mubr.f32.mxu0 0.0
  %2019 = vmatmul.mubr.f32.gmra.mxu0 %v1499
  %v2020 = vpop.f32.mrf.mxu0
  %v2021 = vadd.f32 %v1387, %v2020
  %v2022 = vpop.f32.mrf.mxu0
  %2023 = vmatprep.mubr.f32.mxu0 0.0
  %2024 = vmatmul.mubr.f32.gmra.mxu0 %v1502
  %v2025 = vpop.f32.mrf.mxu0
  %v2026 = vadd.f32 %v1387, %v2025
  %v2027 = vpop.f32.mrf.mxu0
  %2028 = vmatprep.mubr.f32.mxu0 0.0
  %2029 = vmatmul.mubr.f32.gmra.mxu0 %v1505
  %v2030 = vpop.f32.mrf.mxu0
  %v2031 = vadd.f32 %v1387, %v2030
  %v2032 = vpop.f32.mrf.mxu0
  %2033 = vmatprep.mubr.f32.mxu0 0.0
  %2034 = vmatmul.mubr.f32.gmra.mxu0 %v1508
  %v2035 = vpop.f32.mrf.mxu0
  %v2036 = vadd.f32 %v1387, %v2035
  %v2037 = vpop.f32.mrf.mxu0
  %2038 = vmatprep.mubr.f32.mxu0 0.0
  %2039 = vmatmul.mubr.f32.gmra.mxu0 %v1511
  %v2040 = vpop.f32.mrf.mxu0
  %v2041 = vadd.f32 %v1387, %v2040
  %v2042 = vpop.f32.mrf.mxu0
  %2043 = vmatprep.mubr.f32.mxu0 0.0
  %2044 = vmatmul.mubr.f32.gmra.mxu0 %v1514
  %v2045 = vpop.f32.mrf.mxu0
  %v2046 = vadd.f32 %v1387, %v2045
  %v2047 = vpop.f32.mrf.mxu0
  %2048 = vmatprep.mubr.f32.mxu0 0.0
  %2049 = vmatmul.mubr.f32.gmra.mxu0 %v1517
  %v2050 = vpop.f32.mrf.mxu0
  %v2051 = vadd.f32 %v1387, %v2050
  %v2052 = vpop.f32.mrf.mxu0
  %2053 = vmatprep.mubr.f32.mxu0 0.0
  %2054 = vmatmul.mubr.f32.gmra.mxu0 %v1520
  %v2055 = vpop.f32.mrf.mxu0
  %v2056 = vadd.f32 %v1387, %v2055
  %v2057 = vpop.f32.mrf.mxu0
  %2058 = vmatprep.mubr.f32.mxu0 0.0
  %2059 = vmatmul.mubr.f32.gmra.mxu0 %v1523
  %v2060 = vpop.f32.mrf.mxu0
  %v2061 = vadd.f32 %v1387, %v2060
  %v2062 = vpop.f32.mrf.mxu0
  %2063 = vmatprep.mubr.f32.mxu0 0.0
  %2064 = vmatmul.mubr.f32.gmra.mxu0 %v1526
  %v2065 = vpop.f32.mrf.mxu0
  %v2066 = vadd.f32 %v1387, %v2065
  %v2067 = vpop.f32.mrf.mxu0
  %2068 = vmatprep.mubr.f32.mxu0 0.0
  %2069 = vmatmul.mubr.f32.gmra.mxu0 %v1529
  %v2070 = vpop.f32.mrf.mxu0
  %v2071 = vadd.f32 %v1387, %v2070
  %v2072 = vpop.f32.mrf.mxu0
  %2073 = vmatprep.mubr.f32.mxu0 0.0
  %2074 = vmatmul.mubr.f32.gmra.mxu0 %v1532
  %v2075 = vpop.f32.mrf.mxu0
  %v2076 = vadd.f32 %v1387, %v2075
  %v2077 = vpop.f32.mrf.mxu0
  %2078 = vmatprep.mubr.f32.mxu0 0.0
  %2079 = vmatmul.mubr.f32.gmra.mxu0 %v1535
  %v2080 = vpop.f32.mrf.mxu0
  %v2081 = vadd.f32 %v1387, %v2080
  %v2082 = vpop.f32.mrf.mxu0
  %2083 = vmatprep.mubr.f32.mxu0 0.0
  %2084 = vmatmul.mubr.f32.gmra.mxu0 %v1538
  %v2085 = vpop.f32.mrf.mxu0
  %v2086 = vadd.f32 %v1387, %v2085
  %v2087 = vpop.f32.mrf.mxu0
  %2088 = vmatprep.mubr.f32.mxu0 0.0
  %2089 = vmatmul.mubr.f32.gmra.mxu0 %v1541
  %v2090 = vpop.f32.mrf.mxu0
  %v2091 = vadd.f32 %v1387, %v2090
  %v2092 = vpop.f32.mrf.mxu0
  %2093 = vmatprep.mubr.f32.mxu0 0.0
  %2094 = vmatmul.mubr.f32.gmra.mxu0 %v1544
  %v2095 = vpop.f32.mrf.mxu0
  %v2096 = vadd.f32 %v1387, %v2095
  %v2097 = vpop.f32.mrf.mxu0
  %2098 = vmatprep.mubr.f32.mxu0 0.0
  %2099 = vmatmul.mubr.f32.gmra.mxu0 %v1547
  %v2100 = vpop.f32.mrf.mxu0
  %v2101 = vadd.f32 %v1387, %v2100
  %v2102 = vpop.f32.mrf.mxu0
  %2103 = vmatprep.mubr.f32.mxu0 0.0
  %2104 = vmatmul.mubr.f32.gmra.mxu0 %v1550
  %v2105 = vpop.f32.mrf.mxu0
  %v2106 = vadd.f32 %v1387, %v2105
  %v2107 = vpop.f32.mrf.mxu0
  %2108 = vmatprep.mubr.f32.mxu0 0.0
  %2109 = vmatmul.mubr.f32.gmra.mxu0 %v1553
  %v2110 = vpop.f32.mrf.mxu0
  %v2111 = vadd.f32 %v1387, %v2110
  %v2112 = vpop.f32.mrf.mxu0
  %2113 = vmatprep.mubr.f32.mxu0 0.0
  %2114 = vmatmul.mubr.f32.gmra.mxu0 %v1556
  %v2115 = vpop.f32.mrf.mxu0
  %v2116 = vadd.f32 %v1387, %v2115
  %v2117 = vpop.f32.mrf.mxu0
  %2118 = vmatprep.mubr.f32.mxu0 0.0
  %2119 = vmatmul.mubr.f32.gmra.mxu0 %v1559
  %v2120 = vpop.f32.mrf.mxu0
  %v2121 = vadd.f32 %v1387, %v2120
  %v2122 = vpop.f32.mrf.mxu0
  %2123 = vmatprep.mubr.f32.mxu0 0.0
  %2124 = vmatmul.mubr.f32.gmra.mxu0 %v1562
  %v2125 = vpop.f32.mrf.mxu0
  %v2126 = vadd.f32 %v1387, %v2125
  %v2127 = vpop.f32.mrf.mxu0
  %2128 = vmatprep.mubr.f32.mxu0 0.0
  %2129 = vmatmul.mubr.f32.gmra.mxu0 %v1565
  %v2130 = vpop.f32.mrf.mxu0
  %v2131 = vadd.f32 %v1387, %v2130
  %v2132 = vpop.f32.mrf.mxu0
  %2133 = vmatprep.mubr.f32.mxu0 0.0
  %2134 = vmatmul.mubr.f32.gmra.mxu0 %v1568
  %v2135 = vpop.f32.mrf.mxu0
  %v2136 = vadd.f32 %v1387, %v2135
  %v2137 = vpop.f32.mrf.mxu0
  %2138 = vmatprep.mubr.f32.mxu0 0.0
  %2139 = vmatmul.mubr.f32.gmra.mxu0 %v1571
  %v2140 = vpop.f32.mrf.mxu0
  %v2141 = vadd.f32 %v1387, %v2140
  %v2142 = vpop.f32.mrf.mxu0
  %2143 = vmatprep.mubr.f32.mxu0 0.0
  %2144 = vmatmul.mubr.f32.gmra.mxu0 %v1574
  %v2145 = vpop.f32.mrf.mxu0
  %v2146 = vadd.f32 %v1387, %v2145
  %v2147 = vpop.f32.mrf.mxu0
  %2148 = vmatprep.mubr.f32.mxu0 0.0
  %2149 = vmatmul.mubr.f32.gmra.mxu0 %v1577
  %v2150 = vpop.f32.mrf.mxu0
  %v2151 = vadd.f32 %v1387, %v2150
  %v2152 = vpop.f32.mrf.mxu0
  %2153 = vmatprep.mubr.f32.mxu0 0.0
  %2154 = vmatmul.mubr.f32.gmra.mxu0 %v1580
  %v2155 = vpop.f32.mrf.mxu0
  %v2156 = vadd.f32 %v1387, %v2155
  %v2157 = vpop.f32.mrf.mxu0
  %2158 = vmatprep.mubr.f32.mxu0 0.0
  %2159 = vmatmul.mubr.f32.gmra.mxu0 %v1583
  %v2160 = vpop.f32.mrf.mxu0
  %v2161 = vadd.f32 %v1387, %v2160
  %v2162 = vpop.f32.mrf.mxu0
  %2163 = vmatprep.mubr.f32.mxu0 0.0
  %2164 = vmatmul.mubr.f32.gmra.mxu0 %v1586
  %v2165 = vpop.f32.mrf.mxu0
  %v2166 = vadd.f32 %v1387, %v2165
  %v2167 = vpop.f32.mrf.mxu0
  %2168 = vmatprep.mubr.f32.mxu0 0.0
  %2169 = vmatmul.mubr.f32.gmra.mxu0 %v1589
  %v2170 = vpop.f32.mrf.mxu0
  %v2171 = vadd.f32 %v1387, %v2170
  %v2172 = vpop.f32.mrf.mxu0
  %2173 = vmatprep.mubr.f32.mxu0 0.0
  %2174 = vmatmul.mubr.f32.gmra.mxu0 %v1592
  %v2175 = vpop.f32.mrf.mxu0
  %v2176 = vadd.f32 %v1387, %v2175
  %v2177 = vpop.f32.mrf.mxu0
  %2178 = vmatprep.mubr.f32.mxu0 0.0
  %2179 = vmatmul.mubr.f32.gmra.mxu0 %v1595
  %v2180 = vpop.f32.mrf.mxu0
  %v2181 = vadd.f32 %v1387, %v2180
  %v2182 = vpop.f32.mrf.mxu0
  %2183 = vmatprep.mubr.f32.mxu0 0.0
  %2184 = vmatmul.mubr.f32.gmra.mxu0 %v1598
  %v2185 = vpop.f32.mrf.mxu0
  %v2186 = vadd.f32 %v1387, %v2185
  %v2187 = vpop.f32.mrf.mxu0
  %2188 = vmatprep.mubr.f32.mxu0 0.0
  %2189 = vmatmul.mubr.f32.gmra.mxu0 %v1601
  %v2190 = vpop.f32.mrf.mxu0
  %v2191 = vadd.f32 %v1387, %v2190
  %v2192 = vpop.f32.mrf.mxu0
  %2193 = vmatprep.mubr.f32.mxu0 0.0
  %2194 = vmatmul.mubr.f32.gmra.mxu0 %v1604
  %v2195 = vpop.f32.mrf.mxu0
  %v2196 = vadd.f32 %v1387, %v2195
  %v2197 = vpop.f32.mrf.mxu0
  %2198 = vmatprep.mubr.f32.mxu0 0.0
  %2199 = vmatmul.mubr.f32.gmra.mxu0 %v1607
  %v2200 = vpop.f32.mrf.mxu0
  %v2201 = vadd.f32 %v1387, %v2200
  %v2202 = vpop.f32.mrf.mxu0
  %2203 = vmatprep.mubr.f32.mxu0 0.0
  %2204 = vmatmul.mubr.f32.gmra.mxu0 %v1610
  %v2205 = vpop.f32.mrf.mxu0
  %v2206 = vadd.f32 %v1387, %v2205
  %v2207 = vpop.f32.mrf.mxu0
  %2208 = vmatprep.mubr.f32.mxu0 0.0
  %2209 = vmatmul.mubr.f32.gmra.mxu0 %v1613
  %v2210 = vpop.f32.mrf.mxu0
  %v2211 = vadd.f32 %v1387, %v2210
  %v2212 = vpop.f32.mrf.mxu0
  %2213 = vmatprep.mubr.f32.mxu0 0.0
  %2214 = vmatmul.mubr.f32.gmra.mxu0 %v1616
  %v2215 = vpop.f32.mrf.mxu0
  %v2216 = vadd.f32 %v1387, %v2215
  %v2217 = vpop.f32.mrf.mxu0
  %2218 = vmatprep.mubr.f32.mxu0 0.0
  %2219 = vmatmul.mubr.f32.gmra.mxu0 %v1619
  %v2220 = vpop.f32.mrf.mxu0
  %v2221 = vadd.f32 %v1387, %v2220
  %v2222 = vpop.f32.mrf.mxu0
  %2223 = vmatprep.mubr.f32.mxu0 0.0
  %2224 = vmatmul.mubr.f32.gmra.mxu0 %v1622
  %v2225 = vpop.f32.mrf.mxu0
  %v2226 = vadd.f32 %v1387, %v2225
  %v2227 = vpop.f32.mrf.mxu0
  %2228 = vmatprep.mubr.f32.mxu0 0.0
  %2229 = vmatmul.mubr.f32.gmra.mxu0 %v1625
  %v2230 = vpop.f32.mrf.mxu0
  %v2231 = vadd.f32 %v1387, %v2230
  %v2232 = vpop.f32.mrf.mxu0
  %2233 = vmatprep.mubr.f32.mxu0 0.0
  %2234 = vmatmul.mubr.f32.gmra.mxu0 %v1628
  %v2235 = vpop.f32.mrf.mxu0
  %v2236 = vadd.f32 %v1387, %v2235
  %v2237 = vpop.f32.mrf.mxu0
  %2238 = vmatprep.mubr.f32.mxu0 0.0
  %2239 = vmatmul.mubr.f32.gmra.mxu0 %v1631
  %v2240 = vpop.f32.mrf.mxu0
  %v2241 = vadd.f32 %v1387, %v2240
  %v2242 = vpop.f32.mrf.mxu0
  %2243 = vmatprep.mubr.f32.mxu0 0.0
  %2244 = vmatmul.mubr.f32.gmra.mxu0 %v1634
  %v2245 = vpop.f32.mrf.mxu0
  %v2246 = vadd.f32 %v1387, %v2245
  %v2247 = vpop.f32.mrf.mxu0
  %2248 = vmatprep.mubr.f32.mxu0 0.0
  %2249 = vmatmul.mubr.f32.gmra.mxu0 %v1637
  %v2250 = vpop.f32.mrf.mxu0
  %v2251 = vadd.f32 %v1387, %v2250
  %v2252 = vpop.f32.mrf.mxu0
  %2253 = vmatprep.mubr.f32.mxu0 0.0
  %2254 = vmatmul.mubr.f32.gmra.mxu0 %v1640
  %v2255 = vpop.f32.mrf.mxu0
  %v2256 = vadd.f32 %v1387, %v2255
  %v2257 = vpop.f32.mrf.mxu0
  %2258 = vmatprep.mubr.f32.mxu0 0.0
  %2259 = vmatmul.mubr.f32.gmra.mxu0 %v1643
  %v2260 = vpop.f32.mrf.mxu0
  %v2261 = vadd.f32 %v1387, %v2260
  %v2262 = vpop.f32.mrf.mxu0
  %2263 = vmatprep.mubr.f32.mxu0 0.0
  %2264 = vmatmul.mubr.f32.gmra.mxu0 %v1646
  %v2265 = vpop.f32.mrf.mxu0
  %v2266 = vadd.f32 %v1387, %v2265
  %v2267 = vpop.f32.mrf.mxu0
  %2268 = vmatprep.mubr.f32.mxu0 0.0
  %2269 = vmatmul.mubr.f32.gmra.mxu0 %v1649
  %v2270 = vpop.f32.mrf.mxu0
  %v2271 = vadd.f32 %v1387, %v2270
  %v2272 = vpop.f32.mrf.mxu0
  %2273 = vmatprep.mubr.f32.mxu0 0.0
  %2274 = vmatmul.mubr.f32.gmra.mxu0 %v1652
  %v2275 = vpop.f32.mrf.mxu0
  %v2276 = vadd.f32 %v1387, %v2275
  %v2277 = vpop.f32.mrf.mxu0
  %2278 = vmatprep.mubr.f32.mxu0 0.0
  %2279 = vmatmul.mubr.f32.gmra.mxu0 %v1655
  %v2280 = vpop.f32.mrf.mxu0
  %v2281 = vadd.f32 %v1387, %v2280
  %v2282 = vpop.f32.mrf.mxu0
  %2283 = vmatprep.mubr.f32.mxu0 0.0
  %2284 = vmatmul.mubr.f32.gmra.mxu0 %v1658
  %v2285 = vpop.f32.mrf.mxu0
  %v2286 = vadd.f32 %v1387, %v2285
  %v2287 = vpop.f32.mrf.mxu0
  %2288 = vmatprep.mubr.f32.mxu0 0.0
  %2289 = vmatmul.mubr.f32.gmra.mxu0 %v1661
  %v2290 = vpop.f32.mrf.mxu0
  %v2291 = vadd.f32 %v1387, %v2290
  %v2292 = vpop.f32.mrf.mxu0
  %2293 = vmatprep.mubr.f32.mxu0 0.0
  %2294 = vmatmul.mubr.f32.gmra.mxu0 %v1664
  %v2295 = vpop.f32.mrf.mxu0
  %v2296 = vadd.f32 %v1387, %v2295
  %v2297 = vpop.f32.mrf.mxu0
  %2298 = vmatprep.mubr.f32.mxu0 0.0
  %2299 = vmatmul.mubr.f32.gmra.mxu0 %v1667
  %v2300 = vpop.f32.mrf.mxu0
  %v2301 = vadd.f32 %v1387, %v2300
  %v2302 = vpop.f32.mrf.mxu0
  %2303 = vmatprep.mubr.f32.mxu0 0.0
  %2304 = vmatmul.mubr.f32.gmra.mxu0 %v1670
  %v2305 = vpop.f32.mrf.mxu0
  %v2306 = vadd.f32 %v1387, %v2305
  %v2307 = vpop.f32.mrf.mxu0
  %2308 = vmatprep.mubr.f32.mxu0 0.0
  %2309 = vmatmul.mubr.f32.gmra.mxu0 %v1673
  %v2310 = vpop.f32.mrf.mxu0
  %v2311 = vadd.f32 %v1387, %v2310
  %v2312 = vpop.f32.mrf.mxu0
  %2313 = vmatprep.mubr.f32.mxu0 0.0
  %2314 = vmatmul.mubr.f32.gmra.mxu0 %v1676
  %v2315 = vpop.f32.mrf.mxu0
  %v2316 = vadd.f32 %v1387, %v2315
  %v2317 = vpop.f32.mrf.mxu0
  %2318 = vmatprep.mubr.f32.mxu0 0.0
  %2319 = vmatmul.mubr.f32.gmra.mxu0 %v1679
  %v2320 = vpop.f32.mrf.mxu0
  %v2321 = vadd.f32 %v1387, %v2320
  %v2322 = vpop.f32.mrf.mxu0
  %2323 = vmatprep.mubr.f32.mxu0 0.0
  %2324 = vmatmul.mubr.f32.gmra.mxu0 %v1682
  %v2325 = vpop.f32.mrf.mxu0
  %v2326 = vadd.f32 %v1387, %v2325
  %v2327 = vpop.f32.mrf.mxu0
  %2328 = vmatprep.mubr.f32.mxu0 0.0
  %2329 = vmatmul.mubr.f32.gmra.mxu0 %v1685
  %v2330 = vpop.f32.mrf.mxu0
  %v2331 = vadd.f32 %v1387, %v2330
  %v2332 = vpop.f32.mrf.mxu0
  %2333 = vmatprep.mubr.f32.mxu0 0.0
  %2334 = vmatmul.mubr.f32.gmra.mxu0 %v1688
  %v2335 = vpop.f32.mrf.mxu0
  %v2336 = vadd.f32 %v1387, %v2335
  %v2337 = vpop.f32.mrf.mxu0
  %2338 = vmatprep.mubr.f32.mxu0 0.0
  %2339 = vmatmul.mubr.f32.gmra.mxu0 %v1691
  %v2340 = vpop.f32.mrf.mxu0
  %v2341 = vadd.f32 %v1387, %v2340
  %v2342 = vpop.f32.mrf.mxu0
  %2343 = vmatprep.mubr.f32.mxu0 0.0
  %2344 = vmatmul.mubr.f32.gmra.mxu0 %v1694
  %v2345 = vpop.f32.mrf.mxu0
  %v2346 = vadd.f32 %v1387, %v2345
  %v2347 = vpop.f32.mrf.mxu0
  %2348 = vmatprep.mubr.f32.mxu0 0.0
  %2349 = vmatmul.mubr.f32.gmra.mxu0 %v1697
  %v2350 = vpop.f32.mrf.mxu0
  %v2351 = vadd.f32 %v1387, %v2350
  %v2352 = vpop.f32.mrf.mxu0
  %2353 = vmatprep.mubr.f32.mxu0 0.0
  %2354 = vmatmul.mubr.f32.gmra.mxu0 %v1700
  %v2355 = vpop.f32.mrf.mxu0
  %v2356 = vadd.f32 %v1387, %v2355
  %v2357 = vpop.f32.mrf.mxu0
  %2358 = vmatprep.mubr.f32.mxu0 0.0
  %2359 = vmatmul.mubr.f32.gmra.mxu0 %v1703
  %v2360 = vpop.f32.mrf.mxu0
  %v2361 = vadd.f32 %v1387, %v2360
  %v2362 = vpop.f32.mrf.mxu0
  %2363 = vmatprep.mubr.f32.mxu0 0.0
  %2364 = vmatmul.mubr.f32.gmra.mxu0 %v1706
  %v2365 = vpop.f32.mrf.mxu0
  %v2366 = vadd.f32 %v1387, %v2365
  %v2367 = vpop.f32.mrf.mxu0
  %2368 = vmatprep.mubr.f32.mxu0 0.0
  %2369 = vmatmul.mubr.f32.gmra.mxu0 %v1709
  %v2370 = vpop.f32.mrf.mxu0
  %v2371 = vadd.f32 %v1387, %v2370
  %v2372 = vpop.f32.mrf.mxu0
  %2373 = vmatprep.mubr.f32.mxu0 0.0
  %2374 = vmatmul.mubr.f32.gmra.mxu0 %v1712
  %v2375 = vpop.f32.mrf.mxu0
  %v2376 = vadd.f32 %v1387, %v2375
  %v2377 = vpop.f32.mrf.mxu0
  %2378 = vmatprep.mubr.f32.mxu0 0.0
  %2379 = vmatmul.mubr.f32.gmra.mxu0 %v1715
  %v2380 = vpop.f32.mrf.mxu0
  %v2381 = vadd.f32 %v1387, %v2380
  %v2382 = vpop.f32.mrf.mxu0
  %2383 = vmatprep.mubr.f32.mxu0 0.0
  %2384 = vmatmul.mubr.f32.gmra.mxu0 %v1718
  %v2385 = vpop.f32.mrf.mxu0
  %v2386 = vadd.f32 %v1387, %v2385
  %v2387 = vpop.f32.mrf.mxu0
  %2388 = vmatprep.mubr.f32.mxu0 0.0
  %2389 = vmatmul.mubr.f32.gmra.mxu0 %v1721
  %v2390 = vpop.f32.mrf.mxu0
  %v2391 = vadd.f32 %v1387, %v2390
  %v2392 = vpop.f32.mrf.mxu0
  %2393 = vmatprep.mubr.f32.mxu0 0.0
  %2394 = vmatmul.mubr.f32.gmra.mxu0 %v1724
  %v2395 = vpop.f32.mrf.mxu0
  %v2396 = vadd.f32 %v1387, %v2395
  %v2397 = vpop.f32.mrf.mxu0
  %2398 = vmatprep.mubr.f32.mxu0 0.0
  %2399 = vmatmul.mubr.f32.gmra.mxu0 %v1727
  %v2400 = vpop.f32.mrf.mxu0
  %v2401 = vadd.f32 %v1387, %v2400
  %v2402 = vpop.f32.mrf.mxu0
  %2403 = vmatprep.mubr.f32.mxu0 0.0
  %2404 = vmatmul.mubr.f32.gmra.mxu0 %v1730
  %v2405 = vpop.f32.mrf.mxu0
  %v2406 = vadd.f32 %v1387, %v2405
  %v2407 = vpop.f32.mrf.mxu0
  %2408 = vmatprep.mubr.f32.mxu0 0.0
  %2409 = vmatmul.mubr.f32.gmra.mxu0 %v1733
  %v2410 = vpop.f32.mrf.mxu0
  %v2411 = vadd.f32 %v1387, %v2410
  %v2412 = vpop.f32.mrf.mxu0
  %2413 = vmatprep.mubr.f32.mxu0 0.0
  %2414 = vmatmul.mubr.f32.gmra.mxu0 %v1736
  %v2415 = vpop.f32.mrf.mxu0
  %v2416 = vadd.f32 %v1387, %v2415
  %v2417 = vpop.f32.mrf.mxu0
  %2418 = vmatprep.mubr.f32.mxu0 0.0
  %2419 = vmatmul.mubr.f32.gmra.mxu0 %v1739
  %v2420 = vpop.f32.mrf.mxu0
  %v2421 = vadd.f32 %v1387, %v2420
  %v2422 = vpop.f32.mrf.mxu0
  %2423 = vmatprep.mubr.f32.mxu0 0.0
  %2424 = vmatmul.mubr.f32.gmra.mxu0 %v1742
  %v2425 = vpop.f32.mrf.mxu0
  %v2426 = vadd.f32 %v1387, %v2425
  %v2427 = vpop.f32.mrf.mxu0
  %2428 = vmatprep.mubr.f32.mxu0 0.0
  %2429 = vmatmul.mubr.f32.gmra.mxu0 %v1745
  %v2430 = vpop.f32.mrf.mxu0
  %v2431 = vadd.f32 %v1387, %v2430
  %v2432 = vpop.f32.mrf.mxu0
  %2433 = vmatprep.mubr.f32.mxu0 0.0
  %2434 = vmatmul.mubr.f32.gmra.mxu0 %v1748
  %v2435 = vpop.f32.mrf.mxu0
  %v2436 = vadd.f32 %v1387, %v2435
  %v2437 = vpop.f32.mrf.mxu0
  %2438 = vmatprep.mubr.f32.mxu0 0.0
  %2439 = vmatmul.mubr.f32.gmra.mxu0 %v1751
  %v2440 = vpop.f32.mrf.mxu0
  %v2441 = vadd.f32 %v1387, %v2440
  %v2442 = vpop.f32.mrf.mxu0
  %2443 = vmatprep.mubr.f32.mxu0 0.0
  %2444 = vmatmul.mubr.f32.gmra.mxu0 %v1754
  %v2445 = vpop.f32.mrf.mxu0
  %v2446 = vadd.f32 %v1387, %v2445
  %v2447 = vpop.f32.mrf.mxu0
  %2448 = vmatprep.mubr.f32.mxu0 0.0
  %2449 = vmatmul.mubr.f32.gmra.mxu0 %v1757
  %v2450 = vpop.f32.mrf.mxu0
  %v2451 = vadd.f32 %v1387, %v2450
  %v2452 = vpop.f32.mrf.mxu0
  %2453 = vmatprep.mubr.f32.mxu0 0.0
  %2454 = vmatmul.mubr.f32.gmra.mxu0 %v1760
  %v2455 = vpop.f32.mrf.mxu0
  %v2456 = vadd.f32 %v1387, %v2455
  %v2457 = vpop.f32.mrf.mxu0
  %2458 = vmatprep.mubr.f32.mxu0 0.0
  %2459 = vmatmul.mubr.f32.gmra.mxu0 %v1763
  %v2460 = vpop.f32.mrf.mxu0
  %v2461 = vadd.f32 %v1387, %v2460
  %v2462 = vpop.f32.mrf.mxu0
  %2463 = vmatprep.mubr.f32.mxu0 0.0
  %2464 = vmatmul.mubr.f32.gmra.mxu0 %v1766
  %v2465 = vpop.f32.mrf.mxu0
  %v2466 = vadd.f32 %v1387, %v2465
  %v2467 = vpop.f32.mrf.mxu0
  %2468 = vmatprep.mubr.f32.mxu0 0.0
  %2469 = vmatmul.mubr.f32.gmra.mxu0 %v1769
  %v2470 = vpop.f32.mrf.mxu0
  %v2471 = vadd.f32 %v1387, %v2470
  %v2472 = vpop.f32.mrf.mxu0
  %2473 = vmatprep.mubr.f32.mxu0 0.0
  %2474 = vmatmul.mubr.f32.gmra.mxu0 %v1772
  %v2475 = vpop.f32.mrf.mxu0
  %v2476 = vadd.f32 %v1387, %v2475
  %v2477 = vpop.f32.mrf.mxu0
  %2478 = vdwg.mxu0
  %2479 = vst.msk [vmem:[%s5] sm:$0xff] %vm1389, %v1841
  %2480 = vst.msk [vmem:[%s5 + $0x8] sm:$0xff] %vm1389, %v1846
  %2481 = vst.msk [vmem:[%s5 + $0x10] sm:$0xff] %vm1389, %v1851
  %2482 = vst.msk [vmem:[%s5 + $0x18] sm:$0xff] %vm1389, %v1856
  %2483 = vst.msk [vmem:[%s5 + $0x20] sm:$0xff] %vm1389, %v1861
  %2484 = vst.msk [vmem:[%s5 + $0x28] sm:$0xff] %vm1389, %v1866
  %2485 = vst.msk [vmem:[%s5 + $0x30] sm:$0xff] %vm1389, %v1871
  %2486 = vst.msk [vmem:[%s5 + $0x38] sm:$0xff] %vm1389, %v1876
  %2487 = vst.msk [vmem:[%s5 + $0x40] sm:$0xff] %vm1389, %v1881
  %2488 = vst.msk [vmem:[%s5 + $0x48] sm:$0xff] %vm1389, %v1886
  %2489 = vst.msk [vmem:[%s5 + $0x50] sm:$0xff] %vm1389, %v1891
  %2490 = vst.msk [vmem:[%s5 + $0x58] sm:$0xff] %vm1389, %v1896
  %2491 = vst.msk [vmem:[%s5 + $0x60] sm:$0xff] %vm1389, %v1901
  %2492 = vst.msk [vmem:[%s5 + $0x68] sm:$0xff] %vm1389, %v1906
  %2493 = vst.msk [vmem:[%s5 + $0x70] sm:$0xff] %vm1389, %v1911
  %2494 = vst.msk [vmem:[%s5 + $0x78] sm:$0xff] %vm1389, %v1916
  %2495 = vst.msk [vmem:[%s5 + $0x80] sm:$0xff] %vm1389, %v1921
  %2496 = vst.msk [vmem:[%s5 + $0x88] sm:$0xff] %vm1389, %v1926
  %2497 = vst.msk [vmem:[%s5 + $0x90] sm:$0xff] %vm1389, %v1931
  %2498 = vst.msk [vmem:[%s5 + $0x98] sm:$0xff] %vm1389, %v1936
  %2499 = vst.msk [vmem:[%s5 + $0xa0] sm:$0xff] %vm1389, %v1941
  %2500 = vst.msk [vmem:[%s5 + $0xa8] sm:$0xff] %vm1389, %v1946
  %2501 = vst.msk [vmem:[%s5 + $0xb0] sm:$0xff] %vm1389, %v1951
  %2502 = vst.msk [vmem:[%s5 + $0xb8] sm:$0xff] %vm1389, %v1956
  %2503 = vst.msk [vmem:[%s5 + $0xc0] sm:$0xff] %vm1389, %v1961
  %2504 = vst.msk [vmem:[%s5 + $0xc8] sm:$0xff] %vm1389, %v1966
  %2505 = vst.msk [vmem:[%s5 + $0xd0] sm:$0xff] %vm1389, %v1971
  %2506 = vst.msk [vmem:[%s5 + $0xd8] sm:$0xff] %vm1389, %v1976
  %2507 = vst.msk [vmem:[%s5 + $0xe0] sm:$0xff] %vm1389, %v1981
  %2508 = vst.msk [vmem:[%s5 + $0xe8] sm:$0xff] %vm1389, %v1986
  %2509 = vst.msk [vmem:[%s5 + $0xf0] sm:$0xff] %vm1389, %v1991
  %2510 = vst.msk [vmem:[%s5 + $0xf8] sm:$0xff] %vm1389, %v1996
  %2511 = vst.msk [vmem:[%s5 + $0x100] sm:$0xff] %vm1389, %v2001
  %2512 = vst.msk [vmem:[%s5 + $0x108] sm:$0xff] %vm1389, %v2006
  %2513 = vst.msk [vmem:[%s5 + $0x110] sm:$0xff] %vm1389, %v2011
  %2514 = vst.msk [vmem:[%s5 + $0x118] sm:$0xff] %vm1389, %v2016
  %2515 = vst.msk [vmem:[%s5 + $0x120] sm:$0xff] %vm1389, %v2021
  %2516 = vst.msk [vmem:[%s5 + $0x128] sm:$0xff] %vm1389, %v2026
  %2517 = vst.msk [vmem:[%s5 + $0x130] sm:$0xff] %vm1389, %v2031
  %2518 = vst.msk [vmem:[%s5 + $0x138] sm:$0xff] %vm1389, %v2036
  %2519 = vst.msk [vmem:[%s5 + $0x140] sm:$0xff] %vm1389, %v2041
  %2520 = vst.msk [vmem:[%s5 + $0x148] sm:$0xff] %vm1389, %v2046
  %2521 = vst.msk [vmem:[%s5 + $0x150] sm:$0xff] %vm1389, %v2051
  %2522 = vst.msk [vmem:[%s5 + $0x158] sm:$0xff] %vm1389, %v2056
  %2523 = vst.msk [vmem:[%s5 + $0x160] sm:$0xff] %vm1389, %v2061
  %2524 = vst.msk [vmem:[%s5 + $0x168] sm:$0xff] %vm1389, %v2066
  %2525 = vst.msk [vmem:[%s5 + $0x170] sm:$0xff] %vm1389, %v2071
  %2526 = vst.msk [vmem:[%s5 + $0x178] sm:$0xff] %vm1389, %v2076
  %2527 = vst.msk [vmem:[%s5 + $0x180] sm:$0xff] %vm1389, %v2081
  %2528 = vst.msk [vmem:[%s5 + $0x188] sm:$0xff] %vm1389, %v2086
  %2529 = vst.msk [vmem:[%s5 + $0x190] sm:$0xff] %vm1389, %v2091
  %2530 = vst.msk [vmem:[%s5 + $0x198] sm:$0xff] %vm1389, %v2096
  %2531 = vst.msk [vmem:[%s5 + $0x1a0] sm:$0xff] %vm1389, %v2101
  %2532 = vst.msk [vmem:[%s5 + $0x1a8] sm:$0xff] %vm1389, %v2106
  %2533 = vst.msk [vmem:[%s5 + $0x1b0] sm:$0xff] %vm1389, %v2111
  %2534 = vst.msk [vmem:[%s5 + $0x1b8] sm:$0xff] %vm1389, %v2116
  %2535 = vst.msk [vmem:[%s5 + $0x1c0] sm:$0xff] %vm1389, %v2121
  %2536 = vst.msk [vmem:[%s5 + $0x1c8] sm:$0xff] %vm1389, %v2126
  %2537 = vst.msk [vmem:[%s5 + $0x1d0] sm:$0xff] %vm1389, %v2131
  %2538 = vst.msk [vmem:[%s5 + $0x1d8] sm:$0xff] %vm1389, %v2136
  %2539 = vst.msk [vmem:[%s5 + $0x1e0] sm:$0xff] %vm1389, %v2141
  %2540 = vst.msk [vmem:[%s5 + $0x1e8] sm:$0xff] %vm1389, %v2146
  %2541 = vst.msk [vmem:[%s5 + $0x1f0] sm:$0xff] %vm1389, %v2151
  %2542 = vst.msk [vmem:[%s5 + $0x1f8] sm:$0xff] %vm1389, %v2156
  %2543 = vst.msk [vmem:[%s5 + $0x200] sm:$0xff] %vm1389, %v2161
  %2544 = vst.msk [vmem:[%s5 + $0x208] sm:$0xff] %vm1389, %v2166
  %2545 = vst.msk [vmem:[%s5 + $0x210] sm:$0xff] %vm1389, %v2171
  %2546 = vst.msk [vmem:[%s5 + $0x218] sm:$0xff] %vm1389, %v2176
  %2547 = vst.msk [vmem:[%s5 + $0x220] sm:$0xff] %vm1389, %v2181
  %2548 = vst.msk [vmem:[%s5 + $0x228] sm:$0xff] %vm1389, %v2186
  %2549 = vst.msk [vmem:[%s5 + $0x230] sm:$0xff] %vm1389, %v2191
  %2550 = vst.msk [vmem:[%s5 + $0x238] sm:$0xff] %vm1389, %v2196
  %2551 = vst.msk [vmem:[%s5 + $0x240] sm:$0xff] %vm1389, %v2201
  %2552 = vst.msk [vmem:[%s5 + $0x248] sm:$0xff] %vm1389, %v2206
  %2553 = vst.msk [vmem:[%s5 + $0x250] sm:$0xff] %vm1389, %v2211
  %2554 = vst.msk [vmem:[%s5 + $0x258] sm:$0xff] %vm1389, %v2216
  %2555 = vst.msk [vmem:[%s5 + $0x260] sm:$0xff] %vm1389, %v2221
  %2556 = vst.msk [vmem:[%s5 + $0x268] sm:$0xff] %vm1389, %v2226
  %2557 = vst.msk [vmem:[%s5 + $0x270] sm:$0xff] %vm1389, %v2231
  %2558 = vst.msk [vmem:[%s5 + $0x278] sm:$0xff] %vm1389, %v2236
  %2559 = vst.msk [vmem:[%s5 + $0x280] sm:$0xff] %vm1389, %v2241
  %2560 = vst.msk [vmem:[%s5 + $0x288] sm:$0xff] %vm1389, %v2246
  %2561 = vst.msk [vmem:[%s5 + $0x290] sm:$0xff] %vm1389, %v2251
  %2562 = vst.msk [vmem:[%s5 + $0x298] sm:$0xff] %vm1389, %v2256
  %2563 = vst.msk [vmem:[%s5 + $0x2a0] sm:$0xff] %vm1389, %v2261
  %2564 = vst.msk [vmem:[%s5 + $0x2a8] sm:$0xff] %vm1389, %v2266
  %2565 = vst.msk [vmem:[%s5 + $0x2b0] sm:$0xff] %vm1389, %v2271
  %2566 = vst.msk [vmem:[%s5 + $0x2b8] sm:$0xff] %vm1389, %v2276
  %2567 = vst.msk [vmem:[%s5 + $0x2c0] sm:$0xff] %vm1389, %v2281
  %2568 = vst.msk [vmem:[%s5 + $0x2c8] sm:$0xff] %vm1389, %v2286
  %2569 = vst.msk [vmem:[%s5 + $0x2d0] sm:$0xff] %vm1389, %v2291
  %2570 = vst.msk [vmem:[%s5 + $0x2d8] sm:$0xff] %vm1389, %v2296
  %2571 = vst.msk [vmem:[%s5 + $0x2e0] sm:$0xff] %vm1389, %v2301
  %2572 = vst.msk [vmem:[%s5 + $0x2e8] sm:$0xff] %vm1389, %v2306
  %2573 = vst.msk [vmem:[%s5 + $0x2f0] sm:$0xff] %vm1389, %v2311
  %2574 = vst.msk [vmem:[%s5 + $0x2f8] sm:$0xff] %vm1389, %v2316
  %2575 = vst.msk [vmem:[%s5 + $0x300] sm:$0xff] %vm1389, %v2321
  %2576 = vst.msk [vmem:[%s5 + $0x308] sm:$0xff] %vm1389, %v2326
  %2577 = vst.msk [vmem:[%s5 + $0x310] sm:$0xff] %vm1389, %v2331
  %2578 = vst.msk [vmem:[%s5 + $0x318] sm:$0xff] %vm1389, %v2336
  %2579 = vst.msk [vmem:[%s5 + $0x320] sm:$0xff] %vm1389, %v2341
  %2580 = vst.msk [vmem:[%s5 + $0x328] sm:$0xff] %vm1389, %v2346
  %2581 = vst.msk [vmem:[%s5 + $0x330] sm:$0xff] %vm1389, %v2351
  %2582 = vst.msk [vmem:[%s5 + $0x338] sm:$0xff] %vm1389, %v2356
  %2583 = vst.msk [vmem:[%s5 + $0x340] sm:$0xff] %vm1389, %v2361
  %2584 = vst.msk [vmem:[%s5 + $0x348] sm:$0xff] %vm1389, %v2366
  %2585 = vst.msk [vmem:[%s5 + $0x350] sm:$0xff] %vm1389, %v2371
  %2586 = vst.msk [vmem:[%s5 + $0x358] sm:$0xff] %vm1389, %v2376
  %2587 = vst.msk [vmem:[%s5 + $0x360] sm:$0xff] %vm1389, %v2381
  %2588 = vst.msk [vmem:[%s5 + $0x368] sm:$0xff] %vm1389, %v2386
  %2589 = vst.msk [vmem:[%s5 + $0x370] sm:$0xff] %vm1389, %v2391
  %2590 = vst.msk [vmem:[%s5 + $0x378] sm:$0xff] %vm1389, %v2396
  %2591 = vst.msk [vmem:[%s5 + $0x380] sm:$0xff] %vm1389, %v2401
  %2592 = vst.msk [vmem:[%s5 + $0x388] sm:$0xff] %vm1389, %v2406
  %2593 = vst.msk [vmem:[%s5 + $0x390] sm:$0xff] %vm1389, %v2411
  %2594 = vst.msk [vmem:[%s5 + $0x398] sm:$0xff] %vm1389, %v2416
  %2595 = vst.msk [vmem:[%s5 + $0x3a0] sm:$0xff] %vm1389, %v2421
  %2596 = vst.msk [vmem:[%s5 + $0x3a8] sm:$0xff] %vm1389, %v2426
  %2597 = vst.msk [vmem:[%s5 + $0x3b0] sm:$0xff] %vm1389, %v2431
  %2598 = vst.msk [vmem:[%s5 + $0x3b8] sm:$0xff] %vm1389, %v2436
  %2599 = vst.msk [vmem:[%s5 + $0x3c0] sm:$0xff] %vm1389, %v2441
  %2600 = vst.msk [vmem:[%s5 + $0x3c8] sm:$0xff] %vm1389, %v2446
  %2601 = vst.msk [vmem:[%s5 + $0x3d0] sm:$0xff] %vm1389, %v2451
  %2602 = vst.msk [vmem:[%s5 + $0x3d8] sm:$0xff] %vm1389, %v2456
  %2603 = vst.msk [vmem:[%s5 + $0x3e0] sm:$0xff] %vm1389, %v2461
  %2604 = vst.msk [vmem:[%s5 + $0x3e8] sm:$0xff] %vm1389, %v2466
  %2605 = vst.msk [vmem:[%s5 + $0x3f0] sm:$0xff] %vm1389, %v2471
  %2606 = vst.msk [vmem:[%s5 + $0x3f8] sm:$0xff] %vm1389, %v2476
  // Predicated region
  $region22: #{tpu_custom_call.1} parent=0 // pred_check
    _
  $region23: #{tpu_custom_call.1} parent=0 // pred_check_branch
    %2608 = sbr.rel (0) target = $region25
  $region24: #{tpu_custom_call.1} parent=0 // pred_region
    _
  $region25: #{tpu_custom_call.1} parent=0 // pred_fallthru
    _
  // Predicated region
  $region26: #{tpu_custom_call.1} parent=0 // pred_check
    _
  $region27: #{tpu_custom_call.1} parent=0 // pred_check_branch
    %2610 = sbr.rel (0) target = $region29
  $region28: #{tpu_custom_call.1} parent=0 // pred_region
    _
  $region29: #{tpu_custom_call.1} parent=0 // pred_fallthru
    _

</llo_original>
